<compile_context>
chip_gen: v6e
topology: v6e:2x2x1
jax: 0.10.0
libtpu: 0.0.40
codegen_flags: <defaults>
</compile_context>

<pallas_src>
import functools

import numpy as np
import jax
import jax.numpy as jnp
from jax.experimental import pallas as pl
from jax.experimental.pallas import tpu as pltpu


# --------------------------------------------------------------------------
# One-time parameter packing (off the forward path)
# --------------------------------------------------------------------------
def pack_decoder_params(params):
    """Pack all LSTM weights into one (rows, 4H) f32 slab + static layout.

    * weights stored transposed (in_dim, 4H) so the kernel never transposes,
    * i/f/o gate columns and biases pre-scaled by 0.5 (tanh-only gate trick),
    * layers >= 1 stored as a merged [W_ih; W_hh] block (one MXU push/step),
    * every section starts on an 8-row boundary (free static sub-views).
    """
    w_hh0 = params[0][1]
    H = int(w_hh0.shape[1])
    G = 4 * H
    L = len(params)
    D0 = int(params[0][0].shape[1])
    D0p = ((D0 + 7) // 8) * 8

    col_scale = np.full((G,), 0.5, np.float32)
    col_scale[2 * H:3 * H] = 1.0          # g-gate keeps full scale (plain tanh)

    blocks = []
    layout = {"h_dim": H, "n_layers": L, "d0_pad": D0p,
              "merged": [], "bias_rest": []}
    off = 0

    def add(mat):
        nonlocal off
        mat = np.asarray(mat, np.float32)
        rows = mat.shape[0]
        rows_pad = ((rows + 7) // 8) * 8
        blk = np.zeros((rows_pad, G), np.float32)
        blk[:rows] = mat
        blocks.append(blk)
        sec = (off, rows)
        off += rows_pad
        return sec

    w_ih0, _, b_ih0, b_hh0 = params[0]
    wih0 = np.zeros((D0p, G), np.float32)
    wih0[:D0] = np.asarray(w_ih0, np.float32).T
    layout["wih0"] = add(wih0 * col_scale)                              # (D0p, G)
    layout["whh0"] = add(np.asarray(w_hh0, np.float32).T * col_scale)   # (H,  G)
    layout["bias0"] = add(
        (np.asarray(b_ih0, np.float32) + np.asarray(b_hh0, np.float32))
        .reshape(1, G) * col_scale)                                     # (1,  G)

    for (w_ih, w_hh, b_ih, b_hh) in params[1:]:
        wm = np.concatenate([np.asarray(w_ih, np.float32).T,
                             np.asarray(w_hh, np.float32).T], axis=0)   # (2H, G)
        layout["merged"].append(add(wm * col_scale))
        layout["bias_rest"].append(add(
            (np.asarray(b_ih, np.float32) + np.asarray(b_hh, np.float32))
            .reshape(1, G) * col_scale))

    slab = jnp.asarray(np.concatenate(blocks, axis=0))
    return slab, layout


# --------------------------------------------------------------------------
# Fused Pallas kernel: whole multi-layer LSTM forward in one invocation
# --------------------------------------------------------------------------
def lstm_stack_kernel(x_ref, w_ref, out_ref, *, layout):
    """x_ref:   (T*B_pad, D0p)  f32  time-major input
       w_ref:   (rows, 4H)      f32  packed weight slab
       out_ref: (B_pad, T*H)    f32  lane-dense, time-major along lanes
    """
    H = layout["h_dim"]
    G = 4 * H
    L = layout["n_layers"]
    T = layout["t_len"]
    B = layout["b_pad"]
    f32 = jnp.float32

    # Hoisted per-lane scale/offset turning tanh(z) into the right activation
    # per gate group ([i f g o]; sigma(x) = 0.5*tanh(x/2)+0.5, the inner 0.5
    # was folded into the weights at pack time).
    lane = jax.lax.broadcasted_iota(jnp.int32, (B, G), 1)
    is_g = jnp.logical_and(lane >= 2 * H, lane < 3 * H)
    a_sc = jnp.where(is_g, f32(1.0), f32(0.5))
    a_of = jnp.where(is_g, f32(0.0), f32(0.5))

    # ---- load weights once (single packed slab -> static sub-views) --------
    def wslice(sec):
        o, rows = sec
        return w_ref[pl.ds(o, rows), :]

    wih0 = wslice(layout["wih0"])                                   # (D0p, G)
    whh0 = wslice(layout["whh0"])                                   # (H,  G)
    bias0 = wslice(layout["bias0"])                                 # (1,  G)
    merged = [wslice(s) for s in layout["merged"]]                  # (2H, G) each
    bias_rest = [jnp.broadcast_to(wslice(s), (B, G))                # hoisted bcast
                 for s in layout["bias_rest"]]

    # ---- layer-0 input projection for ALL time steps: one MXU matmul -------
    gx0 = jnp.dot(x_ref[...], wih0, preferred_element_type=f32) + bias0  # (T*B, G)

    # ---- LSTM cell: one tanh, roll-aligned gates, full-width VPU updates ----
    def cell(gates, c_prev):
        th = jnp.tanh(gates)                    # single EUP pass over 4H lanes
        act = th * a_sc + a_of                  # [sig(i) | sig(f) | tanh(g) | sig(o)]
        f_al = pltpu.roll(act, 3 * H, axis=1)   # sig(f)  -> lanes [0, H)
        g_al = pltpu.roll(act, 2 * H, axis=1)   # tanh(g) -> lanes [0, H)
        o_al = pltpu.roll(act, 1 * H, axis=1)   # sig(o)  -> lanes [0, H)
        c_new = f_al * c_prev + act * g_al      # valid in lanes [0, H); the
        h_new = o_al * jnp.tanh(c_new)          # upper lanes hold bounded junk
        return h_new, c_new                     # that is never read back.

    # ---- wavefront over (layer, time): layer l runs step t = wave - l -------
    zero = jnp.zeros((B, G), f32)
    h = [zero] * L
    c = [zero] * L
    outs = [None] * T

    for w in range(T + L - 1):                  # fully unrolled (tiny T, L)
        prev_h = list(h)                        # snapshot: all steps in a wave
        prev_c = list(c)                        # are data-independent
        for l in range(L):
            t = w - l
            if not (0 <= t < T):
                continue
            if l == 0:
                gates = gx0[t * B:(t + 1) * B, :] + jnp.dot(
                    prev_h[0][:, :H], whh0, preferred_element_type=f32)
            else:
                inp = jnp.concatenate(
                    [prev_h[l - 1][:, :H], prev_h[l][:, :H]], axis=-1)  # (B, 2H)
                gates = jnp.dot(inp, merged[l - 1],
                                preferred_element_type=f32) + bias_rest[l - 1]
            h[l], c[l] = cell(gates, prev_c[l])
            if l == L - 1:
                outs[t] = h[l]

    # Lane-dense one-shot store: last dim T*H (multiple of 128 for H=32).
    out_ref[...] = jnp.concatenate([o[:, :H] for o in outs], axis=-1)


# --------------------------------------------------------------------------
# Forward wrapper: pad/transpose x, one pallas_call, reshape back
# --------------------------------------------------------------------------
def decoder_rnn_forward(x_bf, slab, layout):
    """x_bf: (B, T, hidden_size) batch_first -> (B, T, output_size)."""
    B, T, D0 = x_bf.shape
    H = layout["h_dim"]
    D0p = layout["d0_pad"]
    B_pad = ((B + 7) // 8) * 8

    # Time-major layout + batch/feature padding (tiny, cheap wrapper ops).
    x_tm = jnp.transpose(x_bf.astype(jnp.float32), (1, 0, 2))     # (T, B, D0)
    x_tm = jnp.pad(x_tm, ((0, 0), (0, B_pad - B), (0, D0p - D0)))
    x_tm = x_tm.reshape(T * B_pad, D0p)

    lay = dict(layout)
    lay["t_len"] = int(T)
    lay["b_pad"] = int(B_pad)

    vmem = pl.BlockSpec(memory_space=pltpu.MemorySpace.VMEM)
    out = pl.pallas_call(
        functools.partial(lstm_stack_kernel, layout=lay),
        out_shape=jax.ShapeDtypeStruct((B_pad, T * H), jnp.float32),
        in_specs=[vmem, vmem],
        out_specs=vmem,
    )(x_tm, slab)

    return out[:B].reshape(B, T, H)                               # batch_first


# --------------------------------------------------------------------------
# Parameter construction (PyTorch nn.LSTM shapes / gate order [i, f, g, o])
# --------------------------------------------------------------------------
def init_lstm_params(key, input_size, hidden_size, num_layers):
    params = []
    k = 1.0 / jnp.sqrt(jnp.float32(hidden_size))
    for layer in range(num_layers):
        d_in = input_size if layer == 0 else hidden_size
        key, k1, k2, k3, k4 = jax.random.split(key, 5)
        w_ih = jax.random.uniform(k1, (4 * hidden_size, d_in), jnp.float32, -k, k)
        w_hh = jax.random.uniform(k2, (4 * hidden_size, hidden_size), jnp.float32, -k, k)
        b_ih = jax.random.uniform(k3, (4 * hidden_size,), jnp.float32, -k, k)
        b_hh = jax.random.uniform(k4, (4 * hidden_size,), jnp.float32, -k, k)
        params.append((w_ih, w_hh, b_ih, b_hh))
    return params, key


# --------------------------------------------------------------------------
# Pure-JAX reference (for correctness check only)
# --------------------------------------------------------------------------
def lstm_layer_ref(x_tm, w_ih, w_hh, b_ih, b_hh):
    T, B, D = x_tm.shape
    H = w_hh.shape[1]

    def step(carry, x_t):
        h, c = carry
        gates = x_t @ w_ih.T + h @ w_hh.T + b_ih + b_hh
        i = jax.nn.sigmoid(gates[:, 0 * H:1 * H])
        f = jax.nn.sigmoid(gates[:, 1 * H:2 * H])
        g = jnp.tanh(gates[:, 2 * H:3 * H])
        o = jax.nn.sigmoid(gates[:, 3 * H:4 * H])
        c = f * c + i * g
        h = o * jnp.tanh(c)
        return (h, c), h

    init = (jnp.zeros((B, H), jnp.float32), jnp.zeros((B, H), jnp.float32))
    _, ys = jax.lax.scan(step, init, x_tm)
    return ys


def decoder_rnn_ref(x_bf, params):
    h = jnp.transpose(x_bf, (1, 0, 2)).astype(jnp.float32)
    for p in params:
        h = lstm_layer_ref(h, *p)
    return jnp.transpose(h, (1, 0, 2))


# --------------------------------------------------------------------------
if __name__ == "__main__":
    # DecoderRNN(hidden_size=16, output_size=32, num_layers=2), batch=2, seq=8.
    B, T = 2, 8
    HIDDEN_SIZE, OUTPUT_SIZE, NUM_LAYERS = 16, 32, 2

    key = jax.random.PRNGKey(0)
    key, xk = jax.random.split(key)
    x = jax.random.normal(xk, (B, T, HIDDEN_SIZE), jnp.float32)

    params, key = init_lstm_params(key, HIDDEN_SIZE, OUTPUT_SIZE, NUM_LAYERS)

    # One-time packing (hoisted out of the forward path).
    slab, layout = pack_decoder_params(params)

    out = jax.block_until_ready(decoder_rnn_forward(x, slab, layout))
    assert out.shape == (B, T, OUTPUT_SIZE), out.shape

    ref = jax.block_until_ready(decoder_rnn_ref(x, params))
    assert jnp.allclose(out, ref, atol=1e-5, rtol=1e-5), (
        float(jnp.max(jnp.abs(out - ref)))
    )

    print("KERNEL_OK")
</pallas_src>

<mosaic_0001>
module attributes {stable_mosaic.version = 11 : i64} {
  func.func @lstm_stack_kernel(%arg0: memref<64x16xf32, #tpu.memory_space<vmem>>, %arg1: memref<128x128xf32, #tpu.memory_space<vmem>>, %arg2: memref<8x256xf32, #tpu.memory_space<vmem>>) attributes {dimension_semantics = [], scalar_prefetch = 0 : i64, scratch_operands = 0 : i64, tpu.core_type = #tpu.core_type<tc>} {
    %0 = tpu.iota {dimensions = array<i32: 1>} : vector<8x128xi32>
    %c64_i32 = arith.constant 64 : i32
    %1 = vector.broadcast %c64_i32 : i32 to vector<8x128xi32>
    %2 = arith.cmpi sge, %0, %1 : vector<8x128xi32>
    %c96_i32 = arith.constant 96 : i32
    %3 = vector.broadcast %c96_i32 : i32 to vector<8x128xi32>
    %4 = arith.cmpi slt, %0, %3 : vector<8x128xi32>
    %5 = arith.andi %2, %4 : vector<8x128xi1>
    %cst = arith.constant 1.000000e+00 : f32
    %cst_0 = arith.constant 5.000000e-01 : f32
    %6 = vector.broadcast %cst : f32 to vector<8x128xf32>
    %7 = vector.broadcast %cst_0 : f32 to vector<8x128xf32>
    %8 = arith.select %5, %6, %7 : vector<8x128xi1>, vector<8x128xf32>
    %cst_1 = arith.constant 0.000000e+00 : f32
    %cst_2 = arith.constant 5.000000e-01 : f32
    %9 = vector.broadcast %cst_1 : f32 to vector<8x128xf32>
    %10 = vector.broadcast %cst_2 : f32 to vector<8x128xf32>
    %11 = arith.select %5, %9, %10 : vector<8x128xi1>, vector<8x128xf32>
    %c0 = arith.constant 0 : index
    %c0_3 = arith.constant 0 : index
    %12 = vector.load %arg1[%c0, %c0_3] : memref<128x128xf32, #tpu.memory_space<vmem>>, vector<16x128xf32>
    %c16 = arith.constant 16 : index
    %c0_4 = arith.constant 0 : index
    %13 = vector.load %arg1[%c16, %c0_4] : memref<128x128xf32, #tpu.memory_space<vmem>>, vector<32x128xf32>
    %c48 = arith.constant 48 : index
    %c0_5 = arith.constant 0 : index
    %14 = vector.load %arg1[%c48, %c0_5] : memref<128x128xf32, #tpu.memory_space<vmem>>, vector<1x128xf32>
    %c56 = arith.constant 56 : index
    %c0_6 = arith.constant 0 : index
    %15 = vector.load %arg1[%c56, %c0_6] : memref<128x128xf32, #tpu.memory_space<vmem>>, vector<64x128xf32>
    %c120 = arith.constant 120 : index
    %c0_7 = arith.constant 0 : index
    %16 = vector.load %arg1[%c120, %c0_7] : memref<128x128xf32, #tpu.memory_space<vmem>>, vector<1x128xf32>
    %17 = vector.shape_cast %16 : vector<1x128xf32> to vector<1x128xf32>
    %18 = vector.broadcast %17 : vector<1x128xf32> to vector<8x128xf32>
    %c0_8 = arith.constant 0 : index
    %c0_9 = arith.constant 0 : index
    %19 = vector.load %arg0[%c0_8, %c0_9] : memref<64x16xf32, #tpu.memory_space<vmem>>, vector<64x16xf32>
    %cst_10 = arith.constant dense<0.000000e+00> : vector<64x128xf32>
    %20 = tpu.matmul %19, %12, %cst_10 {dimension_numbers = #tpu.dot_dimension_numbers<[1], [0], [0], [1], [0, 0, 1, 1], [], []>} : vector<64x16xf32>, vector<16x128xf32>, vector<64x128xf32> -> vector<64x128xf32>
    %21 = vector.broadcast %14 : vector<1x128xf32> to vector<64x128xf32>
    %22 = arith.addf %20, %21 : vector<64x128xf32>
    %cst_11 = arith.constant 0.000000e+00 : f32
    %23 = vector.broadcast %cst_11 : f32 to vector<8x128xf32>
    %24 = vector.extract_strided_slice %22 {offsets = [0, 0], sizes = [8, 128], strides = [1, 1]} : vector<64x128xf32> to vector<8x128xf32>
    %25 = vector.extract_strided_slice %23 {offsets = [0, 0], sizes = [8, 32], strides = [1, 1]} : vector<8x128xf32> to vector<8x32xf32>
    %cst_12 = arith.constant dense<0.000000e+00> : vector<8x128xf32>
    %26 = tpu.matmul %25, %13, %cst_12 {dimension_numbers = #tpu.dot_dimension_numbers<[1], [0], [0], [1], [0, 0, 1, 1], [], []>} : vector<8x32xf32>, vector<32x128xf32>, vector<8x128xf32> -> vector<8x128xf32>
    %27 = arith.addf %24, %26 : vector<8x128xf32>
    %28 = math.tanh %27 : vector<8x128xf32>
    %29 = arith.mulf %28, %8 : vector<8x128xf32>
    %30 = arith.addf %29, %11 : vector<8x128xf32>
    %c96_i32_13 = arith.constant 96 : i32
    %31 = tpu.dynamic_rotate %30 by %c96_i32_13 dim 1 : vector<8x128xf32>, i32 -> vector<8x128xf32>
    %c64_i32_14 = arith.constant 64 : i32
    %32 = tpu.dynamic_rotate %30 by %c64_i32_14 dim 1 : vector<8x128xf32>, i32 -> vector<8x128xf32>
    %c32_i32 = arith.constant 32 : i32
    %33 = tpu.dynamic_rotate %30 by %c32_i32 dim 1 : vector<8x128xf32>, i32 -> vector<8x128xf32>
    %34 = arith.mulf %31, %23 : vector<8x128xf32>
    %35 = arith.mulf %30, %32 : vector<8x128xf32>
    %36 = arith.addf %34, %35 : vector<8x128xf32>
    %37 = math.tanh %36 : vector<8x128xf32>
    %38 = arith.mulf %33, %37 : vector<8x128xf32>
    %39 = vector.extract_strided_slice %22 {offsets = [8, 0], sizes = [8, 128], strides = [1, 1]} : vector<64x128xf32> to vector<8x128xf32>
    %40 = vector.extract_strided_slice %38 {offsets = [0, 0], sizes = [8, 32], strides = [1, 1]} : vector<8x128xf32> to vector<8x32xf32>
    %cst_15 = arith.constant dense<0.000000e+00> : vector<8x128xf32>
    %41 = tpu.matmul %40, %13, %cst_15 {dimension_numbers = #tpu.dot_dimension_numbers<[1], [0], [0], [1], [0, 0, 1, 1], [], []>} : vector<8x32xf32>, vector<32x128xf32>, vector<8x128xf32> -> vector<8x128xf32>
    %42 = arith.addf %39, %41 : vector<8x128xf32>
    %43 = math.tanh %42 : vector<8x128xf32>
    %44 = arith.mulf %43, %8 : vector<8x128xf32>
    %45 = arith.addf %44, %11 : vector<8x128xf32>
    %c96_i32_16 = arith.constant 96 : i32
    %46 = tpu.dynamic_rotate %45 by %c96_i32_16 dim 1 : vector<8x128xf32>, i32 -> vector<8x128xf32>
    %c64_i32_17 = arith.constant 64 : i32
    %47 = tpu.dynamic_rotate %45 by %c64_i32_17 dim 1 : vector<8x128xf32>, i32 -> vector<8x128xf32>
    %c32_i32_18 = arith.constant 32 : i32
    %48 = tpu.dynamic_rotate %45 by %c32_i32_18 dim 1 : vector<8x128xf32>, i32 -> vector<8x128xf32>
    %49 = arith.mulf %46, %36 : vector<8x128xf32>
    %50 = arith.mulf %45, %47 : vector<8x128xf32>
    %51 = arith.addf %49, %50 : vector<8x128xf32>
    %52 = math.tanh %51 : vector<8x128xf32>
    %53 = arith.mulf %48, %52 : vector<8x128xf32>
    %54 = vector.extract_strided_slice %38 {offsets = [0, 0], sizes = [8, 32], strides = [1, 1]} : vector<8x128xf32> to vector<8x32xf32>
    %55 = vector.extract_strided_slice %23 {offsets = [0, 0], sizes = [8, 32], strides = [1, 1]} : vector<8x128xf32> to vector<8x32xf32>
    %56 = tpu.concatenate %54, %55 in 1 : vector<8x32xf32>, vector<8x32xf32> -> vector<8x64xf32>
    %cst_19 = arith.constant dense<0.000000e+00> : vector<8x128xf32>
    %57 = tpu.matmul %56, %15, %cst_19 {dimension_numbers = #tpu.dot_dimension_numbers<[1], [0], [0], [1], [0, 0, 1, 1], [], []>} : vector<8x64xf32>, vector<64x128xf32>, vector<8x128xf32> -> vector<8x128xf32>
    %58 = arith.addf %57, %18 : vector<8x128xf32>
    %59 = math.tanh %58 : vector<8x128xf32>
    %60 = arith.mulf %59, %8 : vector<8x128xf32>
    %61 = arith.addf %60, %11 : vector<8x128xf32>
    %c96_i32_20 = arith.constant 96 : i32
    %62 = tpu.dynamic_rotate %61 by %c96_i32_20 dim 1 : vector<8x128xf32>, i32 -> vector<8x128xf32>
    %c64_i32_21 = arith.constant 64 : i32
    %63 = tpu.dynamic_rotate %61 by %c64_i32_21 dim 1 : vector<8x128xf32>, i32 -> vector<8x128xf32>
    %c32_i32_22 = arith.constant 32 : i32
    %64 = tpu.dynamic_rotate %61 by %c32_i32_22 dim 1 : vector<8x128xf32>, i32 -> vector<8x128xf32>
    %65 = arith.mulf %62, %23 : vector<8x128xf32>
    %66 = arith.mulf %61, %63 : vector<8x128xf32>
    %67 = arith.addf %65, %66 : vector<8x128xf32>
    %68 = math.tanh %67 : vector<8x128xf32>
    %69 = arith.mulf %64, %68 : vector<8x128xf32>
    %70 = vector.extract_strided_slice %22 {offsets = [16, 0], sizes = [8, 128], strides = [1, 1]} : vector<64x128xf32> to vector<8x128xf32>
    %71 = vector.extract_strided_slice %53 {offsets = [0, 0], sizes = [8, 32], strides = [1, 1]} : vector<8x128xf32> to vector<8x32xf32>
    %cst_23 = arith.constant dense<0.000000e+00> : vector<8x128xf32>
    %72 = tpu.matmul %71, %13, %cst_23 {dimension_numbers = #tpu.dot_dimension_numbers<[1], [0], [0], [1], [0, 0, 1, 1], [], []>} : vector<8x32xf32>, vector<32x128xf32>, vector<8x128xf32> -> vector<8x128xf32>
    %73 = arith.addf %70, %72 : vector<8x128xf32>
    %74 = math.tanh %73 : vector<8x128xf32>
    %75 = arith.mulf %74, %8 : vector<8x128xf32>
    %76 = arith.addf %75, %11 : vector<8x128xf32>
    %c96_i32_24 = arith.constant 96 : i32
    %77 = tpu.dynamic_rotate %76 by %c96_i32_24 dim 1 : vector<8x128xf32>, i32 -> vector<8x128xf32>
    %c64_i32_25 = arith.constant 64 : i32
    %78 = tpu.dynamic_rotate %76 by %c64_i32_25 dim 1 : vector<8x128xf32>, i32 -> vector<8x128xf32>
    %c32_i32_26 = arith.constant 32 : i32
    %79 = tpu.dynamic_rotate %76 by %c32_i32_26 dim 1 : vector<8x128xf32>, i32 -> vector<8x128xf32>
    %80 = arith.mulf %77, %51 : vector<8x128xf32>
    %81 = arith.mulf %76, %78 : vector<8x128xf32>
    %82 = arith.addf %80, %81 : vector<8x128xf32>
    %83 = math.tanh %82 : vector<8x128xf32>
    %84 = arith.mulf %79, %83 : vector<8x128xf32>
    %85 = vector.extract_strided_slice %53 {offsets = [0, 0], sizes = [8, 32], strides = [1, 1]} : vector<8x128xf32> to vector<8x32xf32>
    %86 = vector.extract_strided_slice %69 {offsets = [0, 0], sizes = [8, 32], strides = [1, 1]} : vector<8x128xf32> to vector<8x32xf32>
    %87 = tpu.concatenate %85, %86 in 1 : vector<8x32xf32>, vector<8x32xf32> -> vector<8x64xf32>
    %cst_27 = arith.constant dense<0.000000e+00> : vector<8x128xf32>
    %88 = tpu.matmul %87, %15, %cst_27 {dimension_numbers = #tpu.dot_dimension_numbers<[1], [0], [0], [1], [0, 0, 1, 1], [], []>} : vector<8x64xf32>, vector<64x128xf32>, vector<8x128xf32> -> vector<8x128xf32>
    %89 = arith.addf %88, %18 : vector<8x128xf32>
    %90 = math.tanh %89 : vector<8x128xf32>
    %91 = arith.mulf %90, %8 : vector<8x128xf32>
    %92 = arith.addf %91, %11 : vector<8x128xf32>
    %c96_i32_28 = arith.constant 96 : i32
    %93 = tpu.dynamic_rotate %92 by %c96_i32_28 dim 1 : vector<8x128xf32>, i32 -> vector<8x128xf32>
    %c64_i32_29 = arith.constant 64 : i32
    %94 = tpu.dynamic_rotate %92 by %c64_i32_29 dim 1 : vector<8x128xf32>, i32 -> vector<8x128xf32>
    %c32_i32_30 = arith.constant 32 : i32
    %95 = tpu.dynamic_rotate %92 by %c32_i32_30 dim 1 : vector<8x128xf32>, i32 -> vector<8x128xf32>
    %96 = arith.mulf %93, %67 : vector<8x128xf32>
    %97 = arith.mulf %92, %94 : vector<8x128xf32>
    %98 = arith.addf %96, %97 : vector<8x128xf32>
    %99 = math.tanh %98 : vector<8x128xf32>
    %100 = arith.mulf %95, %99 : vector<8x128xf32>
    %101 = vector.extract_strided_slice %22 {offsets = [24, 0], sizes = [8, 128], strides = [1, 1]} : vector<64x128xf32> to vector<8x128xf32>
    %102 = vector.extract_strided_slice %84 {offsets = [0, 0], sizes = [8, 32], strides = [1, 1]} : vector<8x128xf32> to vector<8x32xf32>
    %cst_31 = arith.constant dense<0.000000e+00> : vector<8x128xf32>
    %103 = tpu.matmul %102, %13, %cst_31 {dimension_numbers = #tpu.dot_dimension_numbers<[1], [0], [0], [1], [0, 0, 1, 1], [], []>} : vector<8x32xf32>, vector<32x128xf32>, vector<8x128xf32> -> vector<8x128xf32>
    %104 = arith.addf %101, %103 : vector<8x128xf32>
    %105 = math.tanh %104 : vector<8x128xf32>
    %106 = arith.mulf %105, %8 : vector<8x128xf32>
    %107 = arith.addf %106, %11 : vector<8x128xf32>
    %c96_i32_32 = arith.constant 96 : i32
    %108 = tpu.dynamic_rotate %107 by %c96_i32_32 dim 1 : vector<8x128xf32>, i32 -> vector<8x128xf32>
    %c64_i32_33 = arith.constant 64 : i32
    %109 = tpu.dynamic_rotate %107 by %c64_i32_33 dim 1 : vector<8x128xf32>, i32 -> vector<8x128xf32>
    %c32_i32_34 = arith.constant 32 : i32
    %110 = tpu.dynamic_rotate %107 by %c32_i32_34 dim 1 : vector<8x128xf32>, i32 -> vector<8x128xf32>
    %111 = arith.mulf %108, %82 : vector<8x128xf32>
    %112 = arith.mulf %107, %109 : vector<8x128xf32>
    %113 = arith.addf %111, %112 : vector<8x128xf32>
    %114 = math.tanh %113 : vector<8x128xf32>
    %115 = arith.mulf %110, %114 : vector<8x128xf32>
    %116 = vector.extract_strided_slice %84 {offsets = [0, 0], sizes = [8, 32], strides = [1, 1]} : vector<8x128xf32> to vector<8x32xf32>
    %117 = vector.extract_strided_slice %100 {offsets = [0, 0], sizes = [8, 32], strides = [1, 1]} : vector<8x128xf32> to vector<8x32xf32>
    %118 = tpu.concatenate %116, %117 in 1 : vector<8x32xf32>, vector<8x32xf32> -> vector<8x64xf32>
    %cst_35 = arith.constant dense<0.000000e+00> : vector<8x128xf32>
    %119 = tpu.matmul %118, %15, %cst_35 {dimension_numbers = #tpu.dot_dimension_numbers<[1], [0], [0], [1], [0, 0, 1, 1], [], []>} : vector<8x64xf32>, vector<64x128xf32>, vector<8x128xf32> -> vector<8x128xf32>
    %120 = arith.addf %119, %18 : vector<8x128xf32>
    %121 = math.tanh %120 : vector<8x128xf32>
    %122 = arith.mulf %121, %8 : vector<8x128xf32>
    %123 = arith.addf %122, %11 : vector<8x128xf32>
    %c96_i32_36 = arith.constant 96 : i32
    %124 = tpu.dynamic_rotate %123 by %c96_i32_36 dim 1 : vector<8x128xf32>, i32 -> vector<8x128xf32>
    %c64_i32_37 = arith.constant 64 : i32
    %125 = tpu.dynamic_rotate %123 by %c64_i32_37 dim 1 : vector<8x128xf32>, i32 -> vector<8x128xf32>
    %c32_i32_38 = arith.constant 32 : i32
    %126 = tpu.dynamic_rotate %123 by %c32_i32_38 dim 1 : vector<8x128xf32>, i32 -> vector<8x128xf32>
    %127 = arith.mulf %124, %98 : vector<8x128xf32>
    %128 = arith.mulf %123, %125 : vector<8x128xf32>
    %129 = arith.addf %127, %128 : vector<8x128xf32>
    %130 = math.tanh %129 : vector<8x128xf32>
    %131 = arith.mulf %126, %130 : vector<8x128xf32>
    %132 = vector.extract_strided_slice %22 {offsets = [32, 0], sizes = [8, 128], strides = [1, 1]} : vector<64x128xf32> to vector<8x128xf32>
    %133 = vector.extract_strided_slice %115 {offsets = [0, 0], sizes = [8, 32], strides = [1, 1]} : vector<8x128xf32> to vector<8x32xf32>
    %cst_39 = arith.constant dense<0.000000e+00> : vector<8x128xf32>
    %134 = tpu.matmul %133, %13, %cst_39 {dimension_numbers = #tpu.dot_dimension_numbers<[1], [0], [0], [1], [0, 0, 1, 1], [], []>} : vector<8x32xf32>, vector<32x128xf32>, vector<8x128xf32> -> vector<8x128xf32>
    %135 = arith.addf %132, %134 : vector<8x128xf32>
    %136 = math.tanh %135 : vector<8x128xf32>
    %137 = arith.mulf %136, %8 : vector<8x128xf32>
    %138 = arith.addf %137, %11 : vector<8x128xf32>
    %c96_i32_40 = arith.constant 96 : i32
    %139 = tpu.dynamic_rotate %138 by %c96_i32_40 dim 1 : vector<8x128xf32>, i32 -> vector<8x128xf32>
    %c64_i32_41 = arith.constant 64 : i32
    %140 = tpu.dynamic_rotate %138 by %c64_i32_41 dim 1 : vector<8x128xf32>, i32 -> vector<8x128xf32>
    %c32_i32_42 = arith.constant 32 : i32
    %141 = tpu.dynamic_rotate %138 by %c32_i32_42 dim 1 : vector<8x128xf32>, i32 -> vector<8x128xf32>
    %142 = arith.mulf %139, %113 : vector<8x128xf32>
    %143 = arith.mulf %138, %140 : vector<8x128xf32>
    %144 = arith.addf %142, %143 : vector<8x128xf32>
    %145 = math.tanh %144 : vector<8x128xf32>
    %146 = arith.mulf %141, %145 : vector<8x128xf32>
    %147 = vector.extract_strided_slice %115 {offsets = [0, 0], sizes = [8, 32], strides = [1, 1]} : vector<8x128xf32> to vector<8x32xf32>
    %148 = vector.extract_strided_slice %131 {offsets = [0, 0], sizes = [8, 32], strides = [1, 1]} : vector<8x128xf32> to vector<8x32xf32>
    %149 = tpu.concatenate %147, %148 in 1 : vector<8x32xf32>, vector<8x32xf32> -> vector<8x64xf32>
    %cst_43 = arith.constant dense<0.000000e+00> : vector<8x128xf32>
    %150 = tpu.matmul %149, %15, %cst_43 {dimension_numbers = #tpu.dot_dimension_numbers<[1], [0], [0], [1], [0, 0, 1, 1], [], []>} : vector<8x64xf32>, vector<64x128xf32>, vector<8x128xf32> -> vector<8x128xf32>
    %151 = arith.addf %150, %18 : vector<8x128xf32>
    %152 = math.tanh %151 : vector<8x128xf32>
    %153 = arith.mulf %152, %8 : vector<8x128xf32>
    %154 = arith.addf %153, %11 : vector<8x128xf32>
    %c96_i32_44 = arith.constant 96 : i32
    %155 = tpu.dynamic_rotate %154 by %c96_i32_44 dim 1 : vector<8x128xf32>, i32 -> vector<8x128xf32>
    %c64_i32_45 = arith.constant 64 : i32
    %156 = tpu.dynamic_rotate %154 by %c64_i32_45 dim 1 : vector<8x128xf32>, i32 -> vector<8x128xf32>
    %c32_i32_46 = arith.constant 32 : i32
    %157 = tpu.dynamic_rotate %154 by %c32_i32_46 dim 1 : vector<8x128xf32>, i32 -> vector<8x128xf32>
    %158 = arith.mulf %155, %129 : vector<8x128xf32>
    %159 = arith.mulf %154, %156 : vector<8x128xf32>
    %160 = arith.addf %158, %159 : vector<8x128xf32>
    %161 = math.tanh %160 : vector<8x128xf32>
    %162 = arith.mulf %157, %161 : vector<8x128xf32>
    %163 = vector.extract_strided_slice %22 {offsets = [40, 0], sizes = [8, 128], strides = [1, 1]} : vector<64x128xf32> to vector<8x128xf32>
    %164 = vector.extract_strided_slice %146 {offsets = [0, 0], sizes = [8, 32], strides = [1, 1]} : vector<8x128xf32> to vector<8x32xf32>
    %cst_47 = arith.constant dense<0.000000e+00> : vector<8x128xf32>
    %165 = tpu.matmul %164, %13, %cst_47 {dimension_numbers = #tpu.dot_dimension_numbers<[1], [0], [0], [1], [0, 0, 1, 1], [], []>} : vector<8x32xf32>, vector<32x128xf32>, vector<8x128xf32> -> vector<8x128xf32>
    %166 = arith.addf %163, %165 : vector<8x128xf32>
    %167 = math.tanh %166 : vector<8x128xf32>
    %168 = arith.mulf %167, %8 : vector<8x128xf32>
    %169 = arith.addf %168, %11 : vector<8x128xf32>
    %c96_i32_48 = arith.constant 96 : i32
    %170 = tpu.dynamic_rotate %169 by %c96_i32_48 dim 1 : vector<8x128xf32>, i32 -> vector<8x128xf32>
    %c64_i32_49 = arith.constant 64 : i32
    %171 = tpu.dynamic_rotate %169 by %c64_i32_49 dim 1 : vector<8x128xf32>, i32 -> vector<8x128xf32>
    %c32_i32_50 = arith.constant 32 : i32
    %172 = tpu.dynamic_rotate %169 by %c32_i32_50 dim 1 : vector<8x128xf32>, i32 -> vector<8x128xf32>
    %173 = arith.mulf %170, %144 : vector<8x128xf32>
    %174 = arith.mulf %169, %171 : vector<8x128xf32>
    %175 = arith.addf %173, %174 : vector<8x128xf32>
    %176 = math.tanh %175 : vector<8x128xf32>
    %177 = arith.mulf %172, %176 : vector<8x128xf32>
    %178 = vector.extract_strided_slice %146 {offsets = [0, 0], sizes = [8, 32], strides = [1, 1]} : vector<8x128xf32> to vector<8x32xf32>
    %179 = vector.extract_strided_slice %162 {offsets = [0, 0], sizes = [8, 32], strides = [1, 1]} : vector<8x128xf32> to vector<8x32xf32>
    %180 = tpu.concatenate %178, %179 in 1 : vector<8x32xf32>, vector<8x32xf32> -> vector<8x64xf32>
    %cst_51 = arith.constant dense<0.000000e+00> : vector<8x128xf32>
    %181 = tpu.matmul %180, %15, %cst_51 {dimension_numbers = #tpu.dot_dimension_numbers<[1], [0], [0], [1], [0, 0, 1, 1], [], []>} : vector<8x64xf32>, vector<64x128xf32>, vector<8x128xf32> -> vector<8x128xf32>
    %182 = arith.addf %181, %18 : vector<8x128xf32>
    %183 = math.tanh %182 : vector<8x128xf32>
    %184 = arith.mulf %183, %8 : vector<8x128xf32>
    %185 = arith.addf %184, %11 : vector<8x128xf32>
    %c96_i32_52 = arith.constant 96 : i32
    %186 = tpu.dynamic_rotate %185 by %c96_i32_52 dim 1 : vector<8x128xf32>, i32 -> vector<8x128xf32>
    %c64_i32_53 = arith.constant 64 : i32
    %187 = tpu.dynamic_rotate %185 by %c64_i32_53 dim 1 : vector<8x128xf32>, i32 -> vector<8x128xf32>
    %c32_i32_54 = arith.constant 32 : i32
    %188 = tpu.dynamic_rotate %185 by %c32_i32_54 dim 1 : vector<8x128xf32>, i32 -> vector<8x128xf32>
    %189 = arith.mulf %186, %160 : vector<8x128xf32>
    %190 = arith.mulf %185, %187 : vector<8x128xf32>
    %191 = arith.addf %189, %190 : vector<8x128xf32>
    %192 = math.tanh %191 : vector<8x128xf32>
    %193 = arith.mulf %188, %192 : vector<8x128xf32>
    %194 = vector.extract_strided_slice %22 {offsets = [48, 0], sizes = [8, 128], strides = [1, 1]} : vector<64x128xf32> to vector<8x128xf32>
    %195 = vector.extract_strided_slice %177 {offsets = [0, 0], sizes = [8, 32], strides = [1, 1]} : vector<8x128xf32> to vector<8x32xf32>
    %cst_55 = arith.constant dense<0.000000e+00> : vector<8x128xf32>
    %196 = tpu.matmul %195, %13, %cst_55 {dimension_numbers = #tpu.dot_dimension_numbers<[1], [0], [0], [1], [0, 0, 1, 1], [], []>} : vector<8x32xf32>, vector<32x128xf32>, vector<8x128xf32> -> vector<8x128xf32>
    %197 = arith.addf %194, %196 : vector<8x128xf32>
    %198 = math.tanh %197 : vector<8x128xf32>
    %199 = arith.mulf %198, %8 : vector<8x128xf32>
    %200 = arith.addf %199, %11 : vector<8x128xf32>
    %c96_i32_56 = arith.constant 96 : i32
    %201 = tpu.dynamic_rotate %200 by %c96_i32_56 dim 1 : vector<8x128xf32>, i32 -> vector<8x128xf32>
    %c64_i32_57 = arith.constant 64 : i32
    %202 = tpu.dynamic_rotate %200 by %c64_i32_57 dim 1 : vector<8x128xf32>, i32 -> vector<8x128xf32>
    %c32_i32_58 = arith.constant 32 : i32
    %203 = tpu.dynamic_rotate %200 by %c32_i32_58 dim 1 : vector<8x128xf32>, i32 -> vector<8x128xf32>
    %204 = arith.mulf %201, %175 : vector<8x128xf32>
    %205 = arith.mulf %200, %202 : vector<8x128xf32>
    %206 = arith.addf %204, %205 : vector<8x128xf32>
    %207 = math.tanh %206 : vector<8x128xf32>
    %208 = arith.mulf %203, %207 : vector<8x128xf32>
    %209 = vector.extract_strided_slice %177 {offsets = [0, 0], sizes = [8, 32], strides = [1, 1]} : vector<8x128xf32> to vector<8x32xf32>
    %210 = vector.extract_strided_slice %193 {offsets = [0, 0], sizes = [8, 32], strides = [1, 1]} : vector<8x128xf32> to vector<8x32xf32>
    %211 = tpu.concatenate %209, %210 in 1 : vector<8x32xf32>, vector<8x32xf32> -> vector<8x64xf32>
    %cst_59 = arith.constant dense<0.000000e+00> : vector<8x128xf32>
    %212 = tpu.matmul %211, %15, %cst_59 {dimension_numbers = #tpu.dot_dimension_numbers<[1], [0], [0], [1], [0, 0, 1, 1], [], []>} : vector<8x64xf32>, vector<64x128xf32>, vector<8x128xf32> -> vector<8x128xf32>
    %213 = arith.addf %212, %18 : vector<8x128xf32>
    %214 = math.tanh %213 : vector<8x128xf32>
    %215 = arith.mulf %214, %8 : vector<8x128xf32>
    %216 = arith.addf %215, %11 : vector<8x128xf32>
    %c96_i32_60 = arith.constant 96 : i32
    %217 = tpu.dynamic_rotate %216 by %c96_i32_60 dim 1 : vector<8x128xf32>, i32 -> vector<8x128xf32>
    %c64_i32_61 = arith.constant 64 : i32
    %218 = tpu.dynamic_rotate %216 by %c64_i32_61 dim 1 : vector<8x128xf32>, i32 -> vector<8x128xf32>
    %c32_i32_62 = arith.constant 32 : i32
    %219 = tpu.dynamic_rotate %216 by %c32_i32_62 dim 1 : vector<8x128xf32>, i32 -> vector<8x128xf32>
    %220 = arith.mulf %217, %191 : vector<8x128xf32>
    %221 = arith.mulf %216, %218 : vector<8x128xf32>
    %222 = arith.addf %220, %221 : vector<8x128xf32>
    %223 = math.tanh %222 : vector<8x128xf32>
    %224 = arith.mulf %219, %223 : vector<8x128xf32>
    %225 = vector.extract_strided_slice %22 {offsets = [56, 0], sizes = [8, 128], strides = [1, 1]} : vector<64x128xf32> to vector<8x128xf32>
    %226 = vector.extract_strided_slice %208 {offsets = [0, 0], sizes = [8, 32], strides = [1, 1]} : vector<8x128xf32> to vector<8x32xf32>
    %cst_63 = arith.constant dense<0.000000e+00> : vector<8x128xf32>
    %227 = tpu.matmul %226, %13, %cst_63 {dimension_numbers = #tpu.dot_dimension_numbers<[1], [0], [0], [1], [0, 0, 1, 1], [], []>} : vector<8x32xf32>, vector<32x128xf32>, vector<8x128xf32> -> vector<8x128xf32>
    %228 = arith.addf %225, %227 : vector<8x128xf32>
    %229 = math.tanh %228 : vector<8x128xf32>
    %230 = arith.mulf %229, %8 : vector<8x128xf32>
    %231 = arith.addf %230, %11 : vector<8x128xf32>
    %c96_i32_64 = arith.constant 96 : i32
    %232 = tpu.dynamic_rotate %231 by %c96_i32_64 dim 1 : vector<8x128xf32>, i32 -> vector<8x128xf32>
    %c64_i32_65 = arith.constant 64 : i32
    %233 = tpu.dynamic_rotate %231 by %c64_i32_65 dim 1 : vector<8x128xf32>, i32 -> vector<8x128xf32>
    %c32_i32_66 = arith.constant 32 : i32
    %234 = tpu.dynamic_rotate %231 by %c32_i32_66 dim 1 : vector<8x128xf32>, i32 -> vector<8x128xf32>
    %235 = arith.mulf %232, %206 : vector<8x128xf32>
    %236 = arith.mulf %231, %233 : vector<8x128xf32>
    %237 = arith.addf %235, %236 : vector<8x128xf32>
    %238 = math.tanh %237 : vector<8x128xf32>
    %239 = arith.mulf %234, %238 : vector<8x128xf32>
    %240 = vector.extract_strided_slice %208 {offsets = [0, 0], sizes = [8, 32], strides = [1, 1]} : vector<8x128xf32> to vector<8x32xf32>
    %241 = vector.extract_strided_slice %224 {offsets = [0, 0], sizes = [8, 32], strides = [1, 1]} : vector<8x128xf32> to vector<8x32xf32>
    %242 = tpu.concatenate %240, %241 in 1 : vector<8x32xf32>, vector<8x32xf32> -> vector<8x64xf32>
    %cst_67 = arith.constant dense<0.000000e+00> : vector<8x128xf32>
    %243 = tpu.matmul %242, %15, %cst_67 {dimension_numbers = #tpu.dot_dimension_numbers<[1], [0], [0], [1], [0, 0, 1, 1], [], []>} : vector<8x64xf32>, vector<64x128xf32>, vector<8x128xf32> -> vector<8x128xf32>
    %244 = arith.addf %243, %18 : vector<8x128xf32>
    %245 = math.tanh %244 : vector<8x128xf32>
    %246 = arith.mulf %245, %8 : vector<8x128xf32>
    %247 = arith.addf %246, %11 : vector<8x128xf32>
    %c96_i32_68 = arith.constant 96 : i32
    %248 = tpu.dynamic_rotate %247 by %c96_i32_68 dim 1 : vector<8x128xf32>, i32 -> vector<8x128xf32>
    %c64_i32_69 = arith.constant 64 : i32
    %249 = tpu.dynamic_rotate %247 by %c64_i32_69 dim 1 : vector<8x128xf32>, i32 -> vector<8x128xf32>
    %c32_i32_70 = arith.constant 32 : i32
    %250 = tpu.dynamic_rotate %247 by %c32_i32_70 dim 1 : vector<8x128xf32>, i32 -> vector<8x128xf32>
    %251 = arith.mulf %248, %222 : vector<8x128xf32>
    %252 = arith.mulf %247, %249 : vector<8x128xf32>
    %253 = arith.addf %251, %252 : vector<8x128xf32>
    %254 = math.tanh %253 : vector<8x128xf32>
    %255 = arith.mulf %250, %254 : vector<8x128xf32>
    %256 = vector.extract_strided_slice %239 {offsets = [0, 0], sizes = [8, 32], strides = [1, 1]} : vector<8x128xf32> to vector<8x32xf32>
    %257 = vector.extract_strided_slice %255 {offsets = [0, 0], sizes = [8, 32], strides = [1, 1]} : vector<8x128xf32> to vector<8x32xf32>
    %258 = tpu.concatenate %256, %257 in 1 : vector<8x32xf32>, vector<8x32xf32> -> vector<8x64xf32>
    %cst_71 = arith.constant dense<0.000000e+00> : vector<8x128xf32>
    %259 = tpu.matmul %258, %15, %cst_71 {dimension_numbers = #tpu.dot_dimension_numbers<[1], [0], [0], [1], [0, 0, 1, 1], [], []>} : vector<8x64xf32>, vector<64x128xf32>, vector<8x128xf32> -> vector<8x128xf32>
    %260 = arith.addf %259, %18 : vector<8x128xf32>
    %261 = math.tanh %260 : vector<8x128xf32>
    %262 = arith.mulf %261, %8 : vector<8x128xf32>
    %263 = arith.addf %262, %11 : vector<8x128xf32>
    %c96_i32_72 = arith.constant 96 : i32
    %264 = tpu.dynamic_rotate %263 by %c96_i32_72 dim 1 : vector<8x128xf32>, i32 -> vector<8x128xf32>
    %c64_i32_73 = arith.constant 64 : i32
    %265 = tpu.dynamic_rotate %263 by %c64_i32_73 dim 1 : vector<8x128xf32>, i32 -> vector<8x128xf32>
    %c32_i32_74 = arith.constant 32 : i32
    %266 = tpu.dynamic_rotate %263 by %c32_i32_74 dim 1 : vector<8x128xf32>, i32 -> vector<8x128xf32>
    %267 = arith.mulf %264, %253 : vector<8x128xf32>
    %268 = arith.mulf %263, %265 : vector<8x128xf32>
    %269 = arith.addf %267, %268 : vector<8x128xf32>
    %270 = math.tanh %269 : vector<8x128xf32>
    %271 = arith.mulf %266, %270 : vector<8x128xf32>
    %272 = vector.extract_strided_slice %69 {offsets = [0, 0], sizes = [8, 32], strides = [1, 1]} : vector<8x128xf32> to vector<8x32xf32>
    %273 = vector.extract_strided_slice %100 {offsets = [0, 0], sizes = [8, 32], strides = [1, 1]} : vector<8x128xf32> to vector<8x32xf32>
    %274 = vector.extract_strided_slice %131 {offsets = [0, 0], sizes = [8, 32], strides = [1, 1]} : vector<8x128xf32> to vector<8x32xf32>
    %275 = vector.extract_strided_slice %162 {offsets = [0, 0], sizes = [8, 32], strides = [1, 1]} : vector<8x128xf32> to vector<8x32xf32>
    %276 = vector.extract_strided_slice %193 {offsets = [0, 0], sizes = [8, 32], strides = [1, 1]} : vector<8x128xf32> to vector<8x32xf32>
    %277 = vector.extract_strided_slice %224 {offsets = [0, 0], sizes = [8, 32], strides = [1, 1]} : vector<8x128xf32> to vector<8x32xf32>
    %278 = vector.extract_strided_slice %255 {offsets = [0, 0], sizes = [8, 32], strides = [1, 1]} : vector<8x128xf32> to vector<8x32xf32>
    %279 = vector.extract_strided_slice %271 {offsets = [0, 0], sizes = [8, 32], strides = [1, 1]} : vector<8x128xf32> to vector<8x32xf32>
    %280 = tpu.concatenate %272, %273, %274, %275, %276, %277, %278, %279 in 1 : vector<8x32xf32>, vector<8x32xf32>, vector<8x32xf32>, vector<8x32xf32>, vector<8x32xf32>, vector<8x32xf32>, vector<8x32xf32>, vector<8x32xf32> -> vector<8x256xf32>
    %c0_75 = arith.constant 0 : index
    %c0_76 = arith.constant 0 : index
    %281 = vector.load %arg2[%c0_75, %c0_76] : memref<8x256xf32, #tpu.memory_space<vmem>>, vector<8x256xf32>
    tpu.vector_store %arg2[%c0_75, %c0_76], %280 {strides = array<i32>} : memref<8x256xf32, #tpu.memory_space<vmem>>, vector<8x256xf32>,
    return
  }
}

</mosaic_0001>

<llo_original>
// kernel: tpu_custom_call.1
$region0: #{tpu_custom_call.1}
  #allocation0 [shape = 'u32[]', space=smem, size = 0x4, offset = 0x4, fixed_abs, tag = 'smem constant byte address 0x4 - core index']
  #allocation1 [shape = 'u32[144,128]{1,0:T(1,128)}', space=vmem, size = 0x12000, scoped, tag = 'internal scratch']
  %s0 = inlined_call_operand.vmem [shape: f32[64,16], index: 0, kind: input, shape index: {}]
  %s1 = inlined_call_operand.hbm [shape: f32[128,128], index: 1, kind: input, shape index: {}]
  %s2 = inlined_call_operand.hbm [shape: f32[8,256], index: 2, kind: output, shape index: {}]
  %s3 = sld [smem:[#allocation0]]
  $region22: #{tpu_custom_call.1} parent=0
    _
  %s5 = ssub.s32 1, %s3
  %s6 = scalar_select 0, %s5, %s3
  $region1: #{tpu_custom_call.1} parent=0
    #allocation2 [shape = 'u8[65536]{0}', space=vmem, size = 0x10000, scoped, tag = 'input window, operand 1, single buffered']
    #allocation3 [shape = 's32[1]{0}', space=sflag, size = 0x4, scoped, tag = 'scoped memory for tpu_custom_call.1']
    #allocation4 [shape = 's32[1]{0}', space=sflag, size = 0x4, scoped, tag = 'scoped memory for tpu_custom_call.1']
    #allocation5 [shape = 'u8[8192]{0}', space=vmem, size = 0x2000, scoped, tag = 'output window, operand 0, single buffered']
    %7 = vsyncpa [#allocation3], 0
    %8 = vsyncpa [#allocation4], 0
    // Predicated region
    $region2: #{tpu_custom_call.1} parent=1 // pred_check
      _
    $region3: #{tpu_custom_call.1} parent=1 // pred_check_branch
      %10 = sbr.rel (0) target = $region5
    $region4: #{tpu_custom_call.1} parent=1 // pred_region
      _
    $region5: #{tpu_custom_call.1} parent=1 // pred_fallthru
      _
    // Predicated region
    $region6: #{tpu_custom_call.1} parent=1 // pred_check
      _
    $region7: #{tpu_custom_call.1} parent=1 // pred_check_branch
      %12 = sbr.rel (0) target = $region9
    $region8: #{tpu_custom_call.1} parent=1 // pred_region
      %s14 = ssub.s32 2048, 2048
      %15 = vsyncadd [#allocation3], %s14
      %s16 = sshll.u32 [#allocation2], 4
      %s17 = int_to_ptr.vmem [resolvable:$true] %s16
      %22 = dma.hbm_to_vmem [thread:$0]  %s1, 2048, %s17, [#allocation3], 128, 128, 8
    $region9: #{tpu_custom_call.1} parent=1 // pred_fallthru
      _
    // Predicated region
    $region10: #{tpu_custom_call.1} parent=1 // pred_check
      _
    $region11: #{tpu_custom_call.1} parent=1 // pred_check_branch
      %24 = sbr.rel (0) target = $region13
    $region12: #{tpu_custom_call.1} parent=1 // pred_region
      %25 = dma.done [#allocation3], 2048
    $region13: #{tpu_custom_call.1} parent=1 // pred_fallthru
      _
    %v26 = vlaneseq
    %v27 = vand.u32 %v26, 127
    %vm28 = vcmp.ge.s32.totalorder %v27, 64
    %vm29 = vcmp.lt.s32.totalorder %v27, 96
    %vm30 = vmand %vm28, %vm29
    %v31 = vsel %vm30, 1.0, 0.5
    %v32 = vsel %vm30, 0.0, 0.5
    %v33 = vld [vmem:[#allocation2] sm:$0xff]
    %v34 = vld [vmem:[#allocation2 + $0x8] sm:$0xff]
    %v35 = vld [vmem:[#allocation2 + $0x10] sm:$0xff]
    %v36 = vld [vmem:[#allocation2 + $0x18] sm:$0xff]
    %v37 = vld [vmem:[#allocation2 + $0x20] sm:$0xff]
    %v38 = vld [vmem:[#allocation2 + $0x28] sm:$0xff]
    %v39 = vld [vmem:[#allocation2 + $0x30] sm:$0x1]
    %v40 = vld [vmem:[#allocation2 + $0x38] sm:$0xff]
    %v41 = vld [vmem:[#allocation2 + $0x40] sm:$0xff]
    %v42 = vld [vmem:[#allocation2 + $0x48] sm:$0xff]
    %v43 = vld [vmem:[#allocation2 + $0x50] sm:$0xff]
    %v44 = vld [vmem:[#allocation2 + $0x58] sm:$0xff]
    %v45 = vld [vmem:[#allocation2 + $0x60] sm:$0xff]
    %v46 = vld [vmem:[#allocation2 + $0x68] sm:$0xff]
    %v47 = vld [vmem:[#allocation2 + $0x70] sm:$0xff]
    %v48 = vld [vmem:[#allocation2 + $0x78] sm:$0x1]
    %v49 = vlaneseq
    %v50 = vshrl.u32 %v49, 7
    %v51 = vsub.s32 0, %v50
    %v52 = vrot.slane %v48, %v51
    %v53 = vld [vmem:[%s0] sm:$0xff]
    %v54 = vld [vmem:[%s0 + $0x8] sm:$0xff]
    %v55 = vld [vmem:[%s0 + $0x10] sm:$0xff]
    %v56 = vld [vmem:[%s0 + $0x18] sm:$0xff]
    %v57 = vld [vmem:[%s0 + $0x20] sm:$0xff]
    %v58 = vld [vmem:[%s0 + $0x28] sm:$0xff]
    %v59 = vld [vmem:[%s0 + $0x30] sm:$0xff]
    %v60 = vld [vmem:[%s0 + $0x38] sm:$0xff]
    %v61 = vlaneseq
    %v62 = vshrl.u32 %v61, 7
    %v63 = vsub.s32 0, %v62
    %v64 = vrot.slane %v39, %v63
    %vm65 = vcmask 130048
    %v67 = vsel %vm65, %v53, 0
    %v70 = vsel %vm65, %v54, 0
    %v73 = vsel %vm65, %v55, 0
    %v76 = vsel %vm65, %v56, 0
    %v79 = vsel %vm65, %v57, 0
    %v82 = vsel %vm65, %v58, 0
    %v85 = vsel %vm65, %v59, 0
    %v88 = vsel %vm65, %v60, 0
    %90 = vmatprep.subr.mxu0 0.0
    %91 = vmatpush1.msra.mxu0 0.0
    %92 = vmatprep.subr.mxu0 0.0
    %93 = vmatpush1.msra.mxu0 0.0
    %94 = vmatprep.subr.mxu0 0.0
    %95 = vmatpush1.msra.mxu0 0.0
    %96 = vmatprep.subr.mxu0 0.0
    %97 = vmatpush1.msra.mxu0 0.0
    %98 = vmatprep.subr.mxu0 0.0
    %99 = vmatpush1.msra.mxu0 0.0
    %100 = vmatprep.subr.mxu0 0.0
    %101 = vmatpush1.msra.mxu0 0.0
    %102 = vmatprep.subr.mxu0 0.0
    %103 = vmatpush1.msra.mxu0 0.0
    %104 = vmatprep.subr.mxu0 0.0
    %105 = vmatpush1.msra.mxu0 0.0
    %106 = vmatprep.subr.mxu0 0.0
    %107 = vmatpush1.msra.mxu0 0.0
    %108 = vmatprep.subr.mxu0 0.0
    %109 = vmatpush1.msra.mxu0 0.0
    %110 = vmatprep.subr.mxu0 0.0
    %111 = vmatpush1.msra.mxu0 0.0
    %112 = vmatprep.subr.mxu0 0.0
    %113 = vmatpush1.msra.mxu0 0.0
    %114 = vmatprep.subr.mxu0 0.0
    %115 = vmatpush1.msra.mxu0 0.0
    %116 = vmatprep.subr.mxu0 0.0
    %117 = vmatpush1.msra.mxu0 0.0
    %118 = vmatprep.subr.mxu0 0.0
    %119 = vmatpush1.msra.mxu0 %v34
    %120 = vmatprep.subr.mxu0 0.0
    %121 = vmatpush1.msra.mxu0 %v33
    %122 = vmatprep.subr.mxu0 0.0
    %123 = vmatpush2.msra.mxu0 0.0
    %124 = vmatprep.subr.mxu0 0.0
    %125 = vmatpush2.msra.mxu0 0.0
    %126 = vmatprep.subr.mxu0 0.0
    %127 = vmatpush2.msra.mxu0 0.0
    %128 = vmatprep.subr.mxu0 0.0
    %129 = vmatpush2.msra.mxu0 0.0
    %130 = vmatprep.subr.mxu0 0.0
    %131 = vmatpush2.msra.mxu0 0.0
    %132 = vmatprep.subr.mxu0 0.0
    %133 = vmatpush2.msra.mxu0 0.0
    %134 = vmatprep.subr.mxu0 0.0
    %135 = vmatpush2.msra.mxu0 0.0
    %136 = vmatprep.subr.mxu0 0.0
    %137 = vmatpush2.msra.mxu0 0.0
    %138 = vmatprep.subr.mxu0 0.0
    %139 = vmatpush2.msra.mxu0 0.0
    %140 = vmatprep.subr.mxu0 0.0
    %141 = vmatpush2.msra.mxu0 0.0
    %142 = vmatprep.subr.mxu0 0.0
    %143 = vmatpush2.msra.mxu0 0.0
    %144 = vmatprep.subr.mxu0 0.0
    %145 = vmatpush2.msra.mxu0 0.0
    %146 = vmatprep.subr.mxu0 0.0
    %147 = vmatpush2.msra.mxu0 0.0
    %148 = vmatprep.subr.mxu0 0.0
    %149 = vmatpush2.msra.mxu0 0.0
    %150 = vmatprep.subr.mxu0 0.0
    %151 = vmatpush2.msra.mxu0 0.0
    %152 = vmatprep.subr.mxu0 0.0
    %153 = vmatpush2.msra.mxu0 0.0
    %154 = vmatprep.mubr.f32.mxu0 0.0
    %155 = vmatmul.mubr.f32.gmra.mxu0 %v67
    %v156 = vpop.f32.mrf.mxu0
    %v157 = vadd.f32 %v64, %v156
    %v158 = vpop.f32.mrf.mxu0
    %159 = vmatprep.mubr.f32.mxu0 0.0
    %160 = vmatmul.mubr.f32.gmra.mxu0 %v70
    %v161 = vpop.f32.mrf.mxu0
    %v162 = vadd.f32 %v64, %v161
    %v163 = vpop.f32.mrf.mxu0
    %164 = vmatprep.mubr.f32.mxu0 0.0
    %165 = vmatmul.mubr.f32.gmra.mxu0 %v73
    %v166 = vpop.f32.mrf.mxu0
    %v167 = vadd.f32 %v64, %v166
    %v168 = vpop.f32.mrf.mxu0
    %169 = vmatprep.mubr.f32.mxu0 0.0
    %170 = vmatmul.mubr.f32.gmra.mxu0 %v76
    %v171 = vpop.f32.mrf.mxu0
    %v172 = vadd.f32 %v64, %v171
    %v173 = vpop.f32.mrf.mxu0
    %174 = vmatprep.mubr.f32.mxu0 0.0
    %175 = vmatmul.mubr.f32.gmra.mxu0 %v79
    %v176 = vpop.f32.mrf.mxu0
    %v177 = vadd.f32 %v64, %v176
    %v178 = vpop.f32.mrf.mxu0
    %179 = vmatprep.mubr.f32.mxu0 0.0
    %180 = vmatmul.mubr.f32.gmra.mxu0 %v82
    %v181 = vpop.f32.mrf.mxu0
    %v182 = vadd.f32 %v64, %v181
    %v183 = vpop.f32.mrf.mxu0
    %184 = vmatprep.mubr.f32.mxu0 0.0
    %185 = vmatmul.mubr.f32.gmra.mxu0 %v85
    %v186 = vpop.f32.mrf.mxu0
    %v187 = vadd.f32 %v64, %v186
    %v188 = vpop.f32.mrf.mxu0
    %189 = vmatprep.mubr.f32.mxu0 0.0
    %190 = vmatmul.mubr.f32.gmra.mxu0 %v88
    %v191 = vpop.f32.mrf.mxu0
    %v192 = vadd.f32 %v64, %v191
    %v193 = vpop.f32.mrf.mxu0
    %194 = vdwg.mxu0
    %vm195 = vcmask 261120
    %v197 = vsel %vm195, 0.0, 0
    %199 = vmatprep.subr.mxu0 0.0
    %200 = vmatpush1.msra.mxu0 0.0
    %201 = vmatprep.subr.mxu0 0.0
    %202 = vmatpush1.msra.mxu0 0.0
    %203 = vmatprep.subr.mxu0 0.0
    %204 = vmatpush1.msra.mxu0 0.0
    %205 = vmatprep.subr.mxu0 0.0
    %206 = vmatpush1.msra.mxu0 0.0
    %207 = vmatprep.subr.mxu0 0.0
    %208 = vmatpush1.msra.mxu0 0.0
    %209 = vmatprep.subr.mxu0 0.0
    %210 = vmatpush1.msra.mxu0 0.0
    %211 = vmatprep.subr.mxu0 0.0
    %212 = vmatpush1.msra.mxu0 0.0
    %213 = vmatprep.subr.mxu0 0.0
    %214 = vmatpush1.msra.mxu0 0.0
    %215 = vmatprep.subr.mxu0 0.0
    %216 = vmatpush1.msra.mxu0 0.0
    %217 = vmatprep.subr.mxu0 0.0
    %218 = vmatpush1.msra.mxu0 0.0
    %219 = vmatprep.subr.mxu0 0.0
    %220 = vmatpush1.msra.mxu0 0.0
    %221 = vmatprep.subr.mxu0 0.0
    %222 = vmatpush1.msra.mxu0 0.0
    %223 = vmatprep.subr.mxu0 0.0
    %224 = vmatpush1.msra.mxu0 %v38
    %225 = vmatprep.subr.mxu0 0.0
    %226 = vmatpush1.msra.mxu0 %v37
    %227 = vmatprep.subr.mxu0 0.0
    %228 = vmatpush1.msra.mxu0 %v36
    %229 = vmatprep.subr.mxu0 0.0
    %230 = vmatpush1.msra.mxu0 %v35
    %231 = vmatprep.subr.mxu0 0.0
    %232 = vmatpush2.msra.mxu0 0.0
    %233 = vmatprep.subr.mxu0 0.0
    %234 = vmatpush2.msra.mxu0 0.0
    %235 = vmatprep.subr.mxu0 0.0
    %236 = vmatpush2.msra.mxu0 0.0
    %237 = vmatprep.subr.mxu0 0.0
    %238 = vmatpush2.msra.mxu0 0.0
    %239 = vmatprep.subr.mxu0 0.0
    %240 = vmatpush2.msra.mxu0 0.0
    %241 = vmatprep.subr.mxu0 0.0
    %242 = vmatpush2.msra.mxu0 0.0
    %243 = vmatprep.subr.mxu0 0.0
    %244 = vmatpush2.msra.mxu0 0.0
    %245 = vmatprep.subr.mxu0 0.0
    %246 = vmatpush2.msra.mxu0 0.0
    %247 = vmatprep.subr.mxu0 0.0
    %248 = vmatpush2.msra.mxu0 0.0
    %249 = vmatprep.subr.mxu0 0.0
    %250 = vmatpush2.msra.mxu0 0.0
    %251 = vmatprep.subr.mxu0 0.0
    %252 = vmatpush2.msra.mxu0 0.0
    %253 = vmatprep.subr.mxu0 0.0
    %254 = vmatpush2.msra.mxu0 0.0
    %255 = vmatprep.subr.mxu0 0.0
    %256 = vmatpush2.msra.mxu0 0.0
    %257 = vmatprep.subr.mxu0 0.0
    %258 = vmatpush2.msra.mxu0 0.0
    %259 = vmatprep.subr.mxu0 0.0
    %260 = vmatpush2.msra.mxu0 0.0
    %261 = vmatprep.subr.mxu0 0.0
    %262 = vmatpush2.msra.mxu0 0.0
    %263 = vmatprep.mubr.f32.mxu0 0.0
    %264 = vmatmul.mubr.f32.gmra.mxu0 %v197
    %v265 = vpop.f32.mrf.mxu0
    %v266 = vadd.f32 0.0, %v265
    %v267 = vpop.f32.mrf.mxu0
    %268 = vdwg.mxu0
    %v269 = vadd.f32 %v157, %v266
    %v270 = vtanh.pop %v269
    %v271 = vmul.f32 %v270, %v31
    %v272 = vadd.f32 %v271, %v32
    %273 = vrot.lane.b32.xlu0 %v272, 96
    %v274 = vpop.permute.xlu0 %273
    %275 = vrot.lane.b32.xlu0 %v272, 64
    %v276 = vpop.permute.xlu0 %275
    %277 = vrot.lane.b32.xlu0 %v272, 32
    %v278 = vpop.permute.xlu0 %277
    %v279 = vmul.f32 %v274, 0.0
    %v280 = vmul.f32 %v272, %v276
    %v281 = vadd.f32 %v279, %v280
    %v282 = vtanh.pop %v281
    %v283 = vmul.f32 %v278, %v282
    %v285 = vsel %vm195, %v283, 0
    %287 = vmatprep.subr.mxu0 0.0
    %288 = vmatpush1.msra.mxu0 0.0
    %289 = vmatprep.subr.mxu0 0.0
    %290 = vmatpush1.msra.mxu0 0.0
    %291 = vmatprep.subr.mxu0 0.0
    %292 = vmatpush1.msra.mxu0 0.0
    %293 = vmatprep.subr.mxu0 0.0
    %294 = vmatpush1.msra.mxu0 0.0
    %295 = vmatprep.subr.mxu0 0.0
    %296 = vmatpush1.msra.mxu0 0.0
    %297 = vmatprep.subr.mxu0 0.0
    %298 = vmatpush1.msra.mxu0 0.0
    %299 = vmatprep.subr.mxu0 0.0
    %300 = vmatpush1.msra.mxu0 0.0
    %301 = vmatprep.subr.mxu0 0.0
    %302 = vmatpush1.msra.mxu0 0.0
    %303 = vmatprep.subr.mxu0 0.0
    %304 = vmatpush1.msra.mxu0 0.0
    %305 = vmatprep.subr.mxu0 0.0
    %306 = vmatpush1.msra.mxu0 0.0
    %307 = vmatprep.subr.mxu0 0.0
    %308 = vmatpush1.msra.mxu0 0.0
    %309 = vmatprep.subr.mxu0 0.0
    %310 = vmatpush1.msra.mxu0 0.0
    %311 = vmatprep.subr.mxu0 0.0
    %312 = vmatpush1.msra.mxu0 %v38
    %313 = vmatprep.subr.mxu0 0.0
    %314 = vmatpush1.msra.mxu0 %v37
    %315 = vmatprep.subr.mxu0 0.0
    %316 = vmatpush1.msra.mxu0 %v36
    %317 = vmatprep.subr.mxu0 0.0
    %318 = vmatpush1.msra.mxu0 %v35
    %319 = vmatprep.subr.mxu0 0.0
    %320 = vmatpush2.msra.mxu0 0.0
    %321 = vmatprep.subr.mxu0 0.0
    %322 = vmatpush2.msra.mxu0 0.0
    %323 = vmatprep.subr.mxu0 0.0
    %324 = vmatpush2.msra.mxu0 0.0
    %325 = vmatprep.subr.mxu0 0.0
    %326 = vmatpush2.msra.mxu0 0.0
    %327 = vmatprep.subr.mxu0 0.0
    %328 = vmatpush2.msra.mxu0 0.0
    %329 = vmatprep.subr.mxu0 0.0
    %330 = vmatpush2.msra.mxu0 0.0
    %331 = vmatprep.subr.mxu0 0.0
    %332 = vmatpush2.msra.mxu0 0.0
    %333 = vmatprep.subr.mxu0 0.0
    %334 = vmatpush2.msra.mxu0 0.0
    %335 = vmatprep.subr.mxu0 0.0
    %336 = vmatpush2.msra.mxu0 0.0
    %337 = vmatprep.subr.mxu0 0.0
    %338 = vmatpush2.msra.mxu0 0.0
    %339 = vmatprep.subr.mxu0 0.0
    %340 = vmatpush2.msra.mxu0 0.0
    %341 = vmatprep.subr.mxu0 0.0
    %342 = vmatpush2.msra.mxu0 0.0
    %343 = vmatprep.subr.mxu0 0.0
    %344 = vmatpush2.msra.mxu0 0.0
    %345 = vmatprep.subr.mxu0 0.0
    %346 = vmatpush2.msra.mxu0 0.0
    %347 = vmatprep.subr.mxu0 0.0
    %348 = vmatpush2.msra.mxu0 0.0
    %349 = vmatprep.subr.mxu0 0.0
    %350 = vmatpush2.msra.mxu0 0.0
    %351 = vmatprep.mubr.f32.mxu0 0.0
    %352 = vmatmul.mubr.f32.gmra.mxu0 %v285
    %v353 = vpop.f32.mrf.mxu0
    %v354 = vadd.f32 0.0, %v353
    %v355 = vpop.f32.mrf.mxu0
    %356 = vdwg.mxu0
    %v357 = vadd.f32 %v162, %v354
    %v358 = vtanh.pop %v357
    %v359 = vmul.f32 %v358, %v31
    %v360 = vadd.f32 %v359, %v32
    %361 = vrot.lane.b32.xlu0 %v360, 96
    %v362 = vpop.permute.xlu0 %361
    %363 = vrot.lane.b32.xlu0 %v360, 64
    %v364 = vpop.permute.xlu0 %363
    %365 = vrot.lane.b32.xlu0 %v360, 32
    %v366 = vpop.permute.xlu0 %365
    %v367 = vmul.f32 %v362, %v281
    %v368 = vmul.f32 %v360, %v364
    %v369 = vadd.f32 %v367, %v368
    %v370 = vtanh.pop %v369
    %v371 = vmul.f32 %v366, %v370
    %v372 = vsel %vm195, %v283, 0.0
    %vm373 = vcmask 523264
    %v375 = vsel %vm373, %v372, 0
    %377 = vmatprep.subr.mxu0 0.0
    %378 = vmatpush1.msra.mxu0 0.0
    %379 = vmatprep.subr.mxu0 0.0
    %380 = vmatpush1.msra.mxu0 0.0
    %381 = vmatprep.subr.mxu0 0.0
    %382 = vmatpush1.msra.mxu0 0.0
    %383 = vmatprep.subr.mxu0 0.0
    %384 = vmatpush1.msra.mxu0 0.0
    %385 = vmatprep.subr.mxu0 0.0
    %386 = vmatpush1.msra.mxu0 0.0
    %387 = vmatprep.subr.mxu0 0.0
    %388 = vmatpush1.msra.mxu0 0.0
    %389 = vmatprep.subr.mxu0 0.0
    %390 = vmatpush1.msra.mxu0 0.0
    %391 = vmatprep.subr.mxu0 0.0
    %392 = vmatpush1.msra.mxu0 0.0
    %393 = vmatprep.subr.mxu0 0.0
    %394 = vmatpush1.msra.mxu0 %v47
    %395 = vmatprep.subr.mxu0 0.0
    %396 = vmatpush1.msra.mxu0 %v46
    %397 = vmatprep.subr.mxu0 0.0
    %398 = vmatpush1.msra.mxu0 %v45
    %399 = vmatprep.subr.mxu0 0.0
    %400 = vmatpush1.msra.mxu0 %v44
    %401 = vmatprep.subr.mxu0 0.0
    %402 = vmatpush1.msra.mxu0 %v43
    %403 = vmatprep.subr.mxu0 0.0
    %404 = vmatpush1.msra.mxu0 %v42
    %405 = vmatprep.subr.mxu0 0.0
    %406 = vmatpush1.msra.mxu0 %v41
    %407 = vmatprep.subr.mxu0 0.0
    %408 = vmatpush1.msra.mxu0 %v40
    %409 = vmatprep.subr.mxu0 0.0
    %410 = vmatpush2.msra.mxu0 0.0
    %411 = vmatprep.subr.mxu0 0.0
    %412 = vmatpush2.msra.mxu0 0.0
    %413 = vmatprep.subr.mxu0 0.0
    %414 = vmatpush2.msra.mxu0 0.0
    %415 = vmatprep.subr.mxu0 0.0
    %416 = vmatpush2.msra.mxu0 0.0
    %417 = vmatprep.subr.mxu0 0.0
    %418 = vmatpush2.msra.mxu0 0.0
    %419 = vmatprep.subr.mxu0 0.0
    %420 = vmatpush2.msra.mxu0 0.0
    %421 = vmatprep.subr.mxu0 0.0
    %422 = vmatpush2.msra.mxu0 0.0
    %423 = vmatprep.subr.mxu0 0.0
    %424 = vmatpush2.msra.mxu0 0.0
    %425 = vmatprep.subr.mxu0 0.0
    %426 = vmatpush2.msra.mxu0 0.0
    %427 = vmatprep.subr.mxu0 0.0
    %428 = vmatpush2.msra.mxu0 0.0
    %429 = vmatprep.subr.mxu0 0.0
    %430 = vmatpush2.msra.mxu0 0.0
    %431 = vmatprep.subr.mxu0 0.0
    %432 = vmatpush2.msra.mxu0 0.0
    %433 = vmatprep.subr.mxu0 0.0
    %434 = vmatpush2.msra.mxu0 0.0
    %435 = vmatprep.subr.mxu0 0.0
    %436 = vmatpush2.msra.mxu0 0.0
    %437 = vmatprep.subr.mxu0 0.0
    %438 = vmatpush2.msra.mxu0 0.0
    %439 = vmatprep.subr.mxu0 0.0
    %440 = vmatpush2.msra.mxu0 0.0
    %441 = vmatprep.mubr.f32.mxu0 0.0
    %442 = vmatmul.mubr.f32.gmra.mxu0 %v375
    %v443 = vpop.f32.mrf.mxu0
    %v444 = vadd.f32 %v52, %v443
    %v445 = vpop.f32.mrf.mxu0
    %446 = vdwg.mxu0
    %v447 = vtanh.pop %v444
    %v448 = vmul.f32 %v447, %v31
    %v449 = vadd.f32 %v448, %v32
    %450 = vrot.lane.b32.xlu0 %v449, 96
    %v451 = vpop.permute.xlu0 %450
    %452 = vrot.lane.b32.xlu0 %v449, 64
    %v453 = vpop.permute.xlu0 %452
    %454 = vrot.lane.b32.xlu0 %v449, 32
    %v455 = vpop.permute.xlu0 %454
    %v456 = vmul.f32 %v451, 0.0
    %v457 = vmul.f32 %v449, %v453
    %v458 = vadd.f32 %v456, %v457
    %v459 = vtanh.pop %v458
    %v460 = vmul.f32 %v455, %v459
    %v462 = vsel %vm195, %v371, 0
    %464 = vmatprep.subr.mxu0 0.0
    %465 = vmatpush1.msra.mxu0 0.0
    %466 = vmatprep.subr.mxu0 0.0
    %467 = vmatpush1.msra.mxu0 0.0
    %468 = vmatprep.subr.mxu0 0.0
    %469 = vmatpush1.msra.mxu0 0.0
    %470 = vmatprep.subr.mxu0 0.0
    %471 = vmatpush1.msra.mxu0 0.0
    %472 = vmatprep.subr.mxu0 0.0
    %473 = vmatpush1.msra.mxu0 0.0
    %474 = vmatprep.subr.mxu0 0.0
    %475 = vmatpush1.msra.mxu0 0.0
    %476 = vmatprep.subr.mxu0 0.0
    %477 = vmatpush1.msra.mxu0 0.0
    %478 = vmatprep.subr.mxu0 0.0
    %479 = vmatpush1.msra.mxu0 0.0
    %480 = vmatprep.subr.mxu0 0.0
    %481 = vmatpush1.msra.mxu0 0.0
    %482 = vmatprep.subr.mxu0 0.0
    %483 = vmatpush1.msra.mxu0 0.0
    %484 = vmatprep.subr.mxu0 0.0
    %485 = vmatpush1.msra.mxu0 0.0
    %486 = vmatprep.subr.mxu0 0.0
    %487 = vmatpush1.msra.mxu0 0.0
    %488 = vmatprep.subr.mxu0 0.0
    %489 = vmatpush1.msra.mxu0 %v38
    %490 = vmatprep.subr.mxu0 0.0
    %491 = vmatpush1.msra.mxu0 %v37
    %492 = vmatprep.subr.mxu0 0.0
    %493 = vmatpush1.msra.mxu0 %v36
    %494 = vmatprep.subr.mxu0 0.0
    %495 = vmatpush1.msra.mxu0 %v35
    %496 = vmatprep.subr.mxu0 0.0
    %497 = vmatpush2.msra.mxu0 0.0
    %498 = vmatprep.subr.mxu0 0.0
    %499 = vmatpush2.msra.mxu0 0.0
    %500 = vmatprep.subr.mxu0 0.0
    %501 = vmatpush2.msra.mxu0 0.0
    %502 = vmatprep.subr.mxu0 0.0
    %503 = vmatpush2.msra.mxu0 0.0
    %504 = vmatprep.subr.mxu0 0.0
    %505 = vmatpush2.msra.mxu0 0.0
    %506 = vmatprep.subr.mxu0 0.0
    %507 = vmatpush2.msra.mxu0 0.0
    %508 = vmatprep.subr.mxu0 0.0
    %509 = vmatpush2.msra.mxu0 0.0
    %510 = vmatprep.subr.mxu0 0.0
    %511 = vmatpush2.msra.mxu0 0.0
    %512 = vmatprep.subr.mxu0 0.0
    %513 = vmatpush2.msra.mxu0 0.0
    %514 = vmatprep.subr.mxu0 0.0
    %515 = vmatpush2.msra.mxu0 0.0
    %516 = vmatprep.subr.mxu0 0.0
    %517 = vmatpush2.msra.mxu0 0.0
    %518 = vmatprep.subr.mxu0 0.0
    %519 = vmatpush2.msra.mxu0 0.0
    %520 = vmatprep.subr.mxu0 0.0
    %521 = vmatpush2.msra.mxu0 0.0
    %522 = vmatprep.subr.mxu0 0.0
    %523 = vmatpush2.msra.mxu0 0.0
    %524 = vmatprep.subr.mxu0 0.0
    %525 = vmatpush2.msra.mxu0 0.0
    %526 = vmatprep.subr.mxu0 0.0
    %527 = vmatpush2.msra.mxu0 0.0
    %528 = vmatprep.mubr.f32.mxu0 0.0
    %529 = vmatmul.mubr.f32.gmra.mxu0 %v462
    %v530 = vpop.f32.mrf.mxu0
    %v531 = vadd.f32 0.0, %v530
    %v532 = vpop.f32.mrf.mxu0
    %533 = vdwg.mxu0
    %v534 = vadd.f32 %v167, %v531
    %v535 = vtanh.pop %v534
    %v536 = vmul.f32 %v535, %v31
    %v537 = vadd.f32 %v536, %v32
    %538 = vrot.lane.b32.xlu0 %v537, 96
    %v539 = vpop.permute.xlu0 %538
    %540 = vrot.lane.b32.xlu0 %v537, 64
    %v541 = vpop.permute.xlu0 %540
    %542 = vrot.lane.b32.xlu0 %v537, 32
    %v543 = vpop.permute.xlu0 %542
    %v544 = vmul.f32 %v539, %v369
    %v545 = vmul.f32 %v537, %v541
    %v546 = vadd.f32 %v544, %v545
    %v547 = vtanh.pop %v546
    %v548 = vmul.f32 %v543, %v547
    %550 = vrot.lane.b32.xlu0 %v460, 32
    %v551 = vpop.permute.xlu0 %550
    %v553 = vsel %vm195, %v371, %v551
    %v555 = vsel %vm373, %v553, 0
    %557 = vmatprep.subr.mxu0 0.0
    %558 = vmatpush1.msra.mxu0 0.0
    %559 = vmatprep.subr.mxu0 0.0
    %560 = vmatpush1.msra.mxu0 0.0
    %561 = vmatprep.subr.mxu0 0.0
    %562 = vmatpush1.msra.mxu0 0.0
    %563 = vmatprep.subr.mxu0 0.0
    %564 = vmatpush1.msra.mxu0 0.0
    %565 = vmatprep.subr.mxu0 0.0
    %566 = vmatpush1.msra.mxu0 0.0
    %567 = vmatprep.subr.mxu0 0.0
    %568 = vmatpush1.msra.mxu0 0.0
    %569 = vmatprep.subr.mxu0 0.0
    %570 = vmatpush1.msra.mxu0 0.0
    %571 = vmatprep.subr.mxu0 0.0
    %572 = vmatpush1.msra.mxu0 0.0
    %573 = vmatprep.subr.mxu0 0.0
    %574 = vmatpush1.msra.mxu0 %v47
    %575 = vmatprep.subr.mxu0 0.0
    %576 = vmatpush1.msra.mxu0 %v46
    %577 = vmatprep.subr.mxu0 0.0
    %578 = vmatpush1.msra.mxu0 %v45
    %579 = vmatprep.subr.mxu0 0.0
    %580 = vmatpush1.msra.mxu0 %v44
    %581 = vmatprep.subr.mxu0 0.0
    %582 = vmatpush1.msra.mxu0 %v43
    %583 = vmatprep.subr.mxu0 0.0
    %584 = vmatpush1.msra.mxu0 %v42
    %585 = vmatprep.subr.mxu0 0.0
    %586 = vmatpush1.msra.mxu0 %v41
    %587 = vmatprep.subr.mxu0 0.0
    %588 = vmatpush1.msra.mxu0 %v40
    %589 = vmatprep.subr.mxu0 0.0
    %590 = vmatpush2.msra.mxu0 0.0
    %591 = vmatprep.subr.mxu0 0.0
    %592 = vmatpush2.msra.mxu0 0.0
    %593 = vmatprep.subr.mxu0 0.0
    %594 = vmatpush2.msra.mxu0 0.0
    %595 = vmatprep.subr.mxu0 0.0
    %596 = vmatpush2.msra.mxu0 0.0
    %597 = vmatprep.subr.mxu0 0.0
    %598 = vmatpush2.msra.mxu0 0.0
    %599 = vmatprep.subr.mxu0 0.0
    %600 = vmatpush2.msra.mxu0 0.0
    %601 = vmatprep.subr.mxu0 0.0
    %602 = vmatpush2.msra.mxu0 0.0
    %603 = vmatprep.subr.mxu0 0.0
    %604 = vmatpush2.msra.mxu0 0.0
    %605 = vmatprep.subr.mxu0 0.0
    %606 = vmatpush2.msra.mxu0 0.0
    %607 = vmatprep.subr.mxu0 0.0
    %608 = vmatpush2.msra.mxu0 0.0
    %609 = vmatprep.subr.mxu0 0.0
    %610 = vmatpush2.msra.mxu0 0.0
    %611 = vmatprep.subr.mxu0 0.0
    %612 = vmatpush2.msra.mxu0 0.0
    %613 = vmatprep.subr.mxu0 0.0
    %614 = vmatpush2.msra.mxu0 0.0
    %615 = vmatprep.subr.mxu0 0.0
    %616 = vmatpush2.msra.mxu0 0.0
    %617 = vmatprep.subr.mxu0 0.0
    %618 = vmatpush2.msra.mxu0 0.0
    %619 = vmatprep.subr.mxu0 0.0
    %620 = vmatpush2.msra.mxu0 0.0
    %621 = vmatprep.mubr.f32.mxu0 0.0
    %622 = vmatmul.mubr.f32.gmra.mxu0 %v555
    %v623 = vpop.f32.mrf.mxu0
    %v624 = vadd.f32 %v52, %v623
    %v625 = vpop.f32.mrf.mxu0
    %626 = vdwg.mxu0
    %v627 = vtanh.pop %v624
    %v628 = vmul.f32 %v627, %v31
    %v629 = vadd.f32 %v628, %v32
    %630 = vrot.lane.b32.xlu0 %v629, 96
    %v631 = vpop.permute.xlu0 %630
    %632 = vrot.lane.b32.xlu0 %v629, 64
    %v633 = vpop.permute.xlu0 %632
    %634 = vrot.lane.b32.xlu0 %v629, 32
    %v635 = vpop.permute.xlu0 %634
    %v636 = vmul.f32 %v631, %v458
    %v637 = vmul.f32 %v629, %v633
    %v638 = vadd.f32 %v636, %v637
    %v639 = vtanh.pop %v638
    %v640 = vmul.f32 %v635, %v639
    %v642 = vsel %vm195, %v548, 0
    %644 = vmatprep.subr.mxu0 0.0
    %645 = vmatpush1.msra.mxu0 0.0
    %646 = vmatprep.subr.mxu0 0.0
    %647 = vmatpush1.msra.mxu0 0.0
    %648 = vmatprep.subr.mxu0 0.0
    %649 = vmatpush1.msra.mxu0 0.0
    %650 = vmatprep.subr.mxu0 0.0
    %651 = vmatpush1.msra.mxu0 0.0
    %652 = vmatprep.subr.mxu0 0.0
    %653 = vmatpush1.msra.mxu0 0.0
    %654 = vmatprep.subr.mxu0 0.0
    %655 = vmatpush1.msra.mxu0 0.0
    %656 = vmatprep.subr.mxu0 0.0
    %657 = vmatpush1.msra.mxu0 0.0
    %658 = vmatprep.subr.mxu0 0.0
    %659 = vmatpush1.msra.mxu0 0.0
    %660 = vmatprep.subr.mxu0 0.0
    %661 = vmatpush1.msra.mxu0 0.0
    %662 = vmatprep.subr.mxu0 0.0
    %663 = vmatpush1.msra.mxu0 0.0
    %664 = vmatprep.subr.mxu0 0.0
    %665 = vmatpush1.msra.mxu0 0.0
    %666 = vmatprep.subr.mxu0 0.0
    %667 = vmatpush1.msra.mxu0 0.0
    %668 = vmatprep.subr.mxu0 0.0
    %669 = vmatpush1.msra.mxu0 %v38
    %670 = vmatprep.subr.mxu0 0.0
    %671 = vmatpush1.msra.mxu0 %v37
    %672 = vmatprep.subr.mxu0 0.0
    %673 = vmatpush1.msra.mxu0 %v36
    %674 = vmatprep.subr.mxu0 0.0
    %675 = vmatpush1.msra.mxu0 %v35
    %676 = vmatprep.subr.mxu0 0.0
    %677 = vmatpush2.msra.mxu0 0.0
    %678 = vmatprep.subr.mxu0 0.0
    %679 = vmatpush2.msra.mxu0 0.0
    %680 = vmatprep.subr.mxu0 0.0
    %681 = vmatpush2.msra.mxu0 0.0
    %682 = vmatprep.subr.mxu0 0.0
    %683 = vmatpush2.msra.mxu0 0.0
    %684 = vmatprep.subr.mxu0 0.0
    %685 = vmatpush2.msra.mxu0 0.0
    %686 = vmatprep.subr.mxu0 0.0
    %687 = vmatpush2.msra.mxu0 0.0
    %688 = vmatprep.subr.mxu0 0.0
    %689 = vmatpush2.msra.mxu0 0.0
    %690 = vmatprep.subr.mxu0 0.0
    %691 = vmatpush2.msra.mxu0 0.0
    %692 = vmatprep.subr.mxu0 0.0
    %693 = vmatpush2.msra.mxu0 0.0
    %694 = vmatprep.subr.mxu0 0.0
    %695 = vmatpush2.msra.mxu0 0.0
    %696 = vmatprep.subr.mxu0 0.0
    %697 = vmatpush2.msra.mxu0 0.0
    %698 = vmatprep.subr.mxu0 0.0
    %699 = vmatpush2.msra.mxu0 0.0
    %700 = vmatprep.subr.mxu0 0.0
    %701 = vmatpush2.msra.mxu0 0.0
    %702 = vmatprep.subr.mxu0 0.0
    %703 = vmatpush2.msra.mxu0 0.0
    %704 = vmatprep.subr.mxu0 0.0
    %705 = vmatpush2.msra.mxu0 0.0
    %706 = vmatprep.subr.mxu0 0.0
    %707 = vmatpush2.msra.mxu0 0.0
    %708 = vmatprep.mubr.f32.mxu0 0.0
    %709 = vmatmul.mubr.f32.gmra.mxu0 %v642
    %v710 = vpop.f32.mrf.mxu0
    %v711 = vadd.f32 0.0, %v710
    %v712 = vpop.f32.mrf.mxu0
    %713 = vdwg.mxu0
    %v714 = vadd.f32 %v172, %v711
    %v715 = vtanh.pop %v714
    %v716 = vmul.f32 %v715, %v31
    %v717 = vadd.f32 %v716, %v32
    %718 = vrot.lane.b32.xlu0 %v717, 96
    %v719 = vpop.permute.xlu0 %718
    %720 = vrot.lane.b32.xlu0 %v717, 64
    %v721 = vpop.permute.xlu0 %720
    %722 = vrot.lane.b32.xlu0 %v717, 32
    %v723 = vpop.permute.xlu0 %722
    %v724 = vmul.f32 %v719, %v546
    %v725 = vmul.f32 %v717, %v721
    %v726 = vadd.f32 %v724, %v725
    %v727 = vtanh.pop %v726
    %v728 = vmul.f32 %v723, %v727
    %730 = vrot.lane.b32.xlu0 %v640, 32
    %v731 = vpop.permute.xlu0 %730
    %v733 = vsel %vm195, %v548, %v731
    %v735 = vsel %vm373, %v733, 0
    %737 = vmatprep.subr.mxu0 0.0
    %738 = vmatpush1.msra.mxu0 0.0
    %739 = vmatprep.subr.mxu0 0.0
    %740 = vmatpush1.msra.mxu0 0.0
    %741 = vmatprep.subr.mxu0 0.0
    %742 = vmatpush1.msra.mxu0 0.0
    %743 = vmatprep.subr.mxu0 0.0
    %744 = vmatpush1.msra.mxu0 0.0
    %745 = vmatprep.subr.mxu0 0.0
    %746 = vmatpush1.msra.mxu0 0.0
    %747 = vmatprep.subr.mxu0 0.0
    %748 = vmatpush1.msra.mxu0 0.0
    %749 = vmatprep.subr.mxu0 0.0
    %750 = vmatpush1.msra.mxu0 0.0
    %751 = vmatprep.subr.mxu0 0.0
    %752 = vmatpush1.msra.mxu0 0.0
    %753 = vmatprep.subr.mxu0 0.0
    %754 = vmatpush1.msra.mxu0 %v47
    %755 = vmatprep.subr.mxu0 0.0
    %756 = vmatpush1.msra.mxu0 %v46
    %757 = vmatprep.subr.mxu0 0.0
    %758 = vmatpush1.msra.mxu0 %v45
    %759 = vmatprep.subr.mxu0 0.0
    %760 = vmatpush1.msra.mxu0 %v44
    %761 = vmatprep.subr.mxu0 0.0
    %762 = vmatpush1.msra.mxu0 %v43
    %763 = vmatprep.subr.mxu0 0.0
    %764 = vmatpush1.msra.mxu0 %v42
    %765 = vmatprep.subr.mxu0 0.0
    %766 = vmatpush1.msra.mxu0 %v41
    %767 = vmatprep.subr.mxu0 0.0
    %768 = vmatpush1.msra.mxu0 %v40
    %769 = vmatprep.subr.mxu0 0.0
    %770 = vmatpush2.msra.mxu0 0.0
    %771 = vmatprep.subr.mxu0 0.0
    %772 = vmatpush2.msra.mxu0 0.0
    %773 = vmatprep.subr.mxu0 0.0
    %774 = vmatpush2.msra.mxu0 0.0
    %775 = vmatprep.subr.mxu0 0.0
    %776 = vmatpush2.msra.mxu0 0.0
    %777 = vmatprep.subr.mxu0 0.0
    %778 = vmatpush2.msra.mxu0 0.0
    %779 = vmatprep.subr.mxu0 0.0
    %780 = vmatpush2.msra.mxu0 0.0
    %781 = vmatprep.subr.mxu0 0.0
    %782 = vmatpush2.msra.mxu0 0.0
    %783 = vmatprep.subr.mxu0 0.0
    %784 = vmatpush2.msra.mxu0 0.0
    %785 = vmatprep.subr.mxu0 0.0
    %786 = vmatpush2.msra.mxu0 0.0
    %787 = vmatprep.subr.mxu0 0.0
    %788 = vmatpush2.msra.mxu0 0.0
    %789 = vmatprep.subr.mxu0 0.0
    %790 = vmatpush2.msra.mxu0 0.0
    %791 = vmatprep.subr.mxu0 0.0
    %792 = vmatpush2.msra.mxu0 0.0
    %793 = vmatprep.subr.mxu0 0.0
    %794 = vmatpush2.msra.mxu0 0.0
    %795 = vmatprep.subr.mxu0 0.0
    %796 = vmatpush2.msra.mxu0 0.0
    %797 = vmatprep.subr.mxu0 0.0
    %798 = vmatpush2.msra.mxu0 0.0
    %799 = vmatprep.subr.mxu0 0.0
    %800 = vmatpush2.msra.mxu0 0.0
    %801 = vmatprep.mubr.f32.mxu0 0.0
    %802 = vmatmul.mubr.f32.gmra.mxu0 %v735
    %v803 = vpop.f32.mrf.mxu0
    %v804 = vadd.f32 %v52, %v803
    %v805 = vpop.f32.mrf.mxu0
    %806 = vdwg.mxu0
    %v807 = vtanh.pop %v804
    %v808 = vmul.f32 %v807, %v31
    %v809 = vadd.f32 %v808, %v32
    %810 = vrot.lane.b32.xlu0 %v809, 96
    %v811 = vpop.permute.xlu0 %810
    %812 = vrot.lane.b32.xlu0 %v809, 64
    %v813 = vpop.permute.xlu0 %812
    %814 = vrot.lane.b32.xlu0 %v809, 32
    %v815 = vpop.permute.xlu0 %814
    %v816 = vmul.f32 %v811, %v638
    %v817 = vmul.f32 %v809, %v813
    %v818 = vadd.f32 %v816, %v817
    %v819 = vtanh.pop %v818
    %v820 = vmul.f32 %v815, %v819
    %v822 = vsel %vm195, %v728, 0
    %824 = vmatprep.subr.mxu0 0.0
    %825 = vmatpush1.msra.mxu0 0.0
    %826 = vmatprep.subr.mxu0 0.0
    %827 = vmatpush1.msra.mxu0 0.0
    %828 = vmatprep.subr.mxu0 0.0
    %829 = vmatpush1.msra.mxu0 0.0
    %830 = vmatprep.subr.mxu0 0.0
    %831 = vmatpush1.msra.mxu0 0.0
    %832 = vmatprep.subr.mxu0 0.0
    %833 = vmatpush1.msra.mxu0 0.0
    %834 = vmatprep.subr.mxu0 0.0
    %835 = vmatpush1.msra.mxu0 0.0
    %836 = vmatprep.subr.mxu0 0.0
    %837 = vmatpush1.msra.mxu0 0.0
    %838 = vmatprep.subr.mxu0 0.0
    %839 = vmatpush1.msra.mxu0 0.0
    %840 = vmatprep.subr.mxu0 0.0
    %841 = vmatpush1.msra.mxu0 0.0
    %842 = vmatprep.subr.mxu0 0.0
    %843 = vmatpush1.msra.mxu0 0.0
    %844 = vmatprep.subr.mxu0 0.0
    %845 = vmatpush1.msra.mxu0 0.0
    %846 = vmatprep.subr.mxu0 0.0
    %847 = vmatpush1.msra.mxu0 0.0
    %848 = vmatprep.subr.mxu0 0.0
    %849 = vmatpush1.msra.mxu0 %v38
    %850 = vmatprep.subr.mxu0 0.0
    %851 = vmatpush1.msra.mxu0 %v37
    %852 = vmatprep.subr.mxu0 0.0
    %853 = vmatpush1.msra.mxu0 %v36
    %854 = vmatprep.subr.mxu0 0.0
    %855 = vmatpush1.msra.mxu0 %v35
    %856 = vmatprep.subr.mxu0 0.0
    %857 = vmatpush2.msra.mxu0 0.0
    %858 = vmatprep.subr.mxu0 0.0
    %859 = vmatpush2.msra.mxu0 0.0
    %860 = vmatprep.subr.mxu0 0.0
    %861 = vmatpush2.msra.mxu0 0.0
    %862 = vmatprep.subr.mxu0 0.0
    %863 = vmatpush2.msra.mxu0 0.0
    %864 = vmatprep.subr.mxu0 0.0
    %865 = vmatpush2.msra.mxu0 0.0
    %866 = vmatprep.subr.mxu0 0.0
    %867 = vmatpush2.msra.mxu0 0.0
    %868 = vmatprep.subr.mxu0 0.0
    %869 = vmatpush2.msra.mxu0 0.0
    %870 = vmatprep.subr.mxu0 0.0
    %871 = vmatpush2.msra.mxu0 0.0
    %872 = vmatprep.subr.mxu0 0.0
    %873 = vmatpush2.msra.mxu0 0.0
    %874 = vmatprep.subr.mxu0 0.0
    %875 = vmatpush2.msra.mxu0 0.0
    %876 = vmatprep.subr.mxu0 0.0
    %877 = vmatpush2.msra.mxu0 0.0
    %878 = vmatprep.subr.mxu0 0.0
    %879 = vmatpush2.msra.mxu0 0.0
    %880 = vmatprep.subr.mxu0 0.0
    %881 = vmatpush2.msra.mxu0 0.0
    %882 = vmatprep.subr.mxu0 0.0
    %883 = vmatpush2.msra.mxu0 0.0
    %884 = vmatprep.subr.mxu0 0.0
    %885 = vmatpush2.msra.mxu0 0.0
    %886 = vmatprep.subr.mxu0 0.0
    %887 = vmatpush2.msra.mxu0 0.0
    %888 = vmatprep.mubr.f32.mxu0 0.0
    %889 = vmatmul.mubr.f32.gmra.mxu0 %v822
    %v890 = vpop.f32.mrf.mxu0
    %v891 = vadd.f32 0.0, %v890
    %v892 = vpop.f32.mrf.mxu0
    %893 = vdwg.mxu0
    %v894 = vadd.f32 %v177, %v891
    %v895 = vtanh.pop %v894
    %v896 = vmul.f32 %v895, %v31
    %v897 = vadd.f32 %v896, %v32
    %898 = vrot.lane.b32.xlu0 %v897, 96
    %v899 = vpop.permute.xlu0 %898
    %900 = vrot.lane.b32.xlu0 %v897, 64
    %v901 = vpop.permute.xlu0 %900
    %902 = vrot.lane.b32.xlu0 %v897, 32
    %v903 = vpop.permute.xlu0 %902
    %v904 = vmul.f32 %v899, %v726
    %v905 = vmul.f32 %v897, %v901
    %v906 = vadd.f32 %v904, %v905
    %v907 = vtanh.pop %v906
    %v908 = vmul.f32 %v903, %v907
    %910 = vrot.lane.b32.xlu0 %v820, 32
    %v911 = vpop.permute.xlu0 %910
    %v913 = vsel %vm195, %v728, %v911
    %v915 = vsel %vm373, %v913, 0
    %917 = vmatprep.subr.mxu0 0.0
    %918 = vmatpush1.msra.mxu0 0.0
    %919 = vmatprep.subr.mxu0 0.0
    %920 = vmatpush1.msra.mxu0 0.0
    %921 = vmatprep.subr.mxu0 0.0
    %922 = vmatpush1.msra.mxu0 0.0
    %923 = vmatprep.subr.mxu0 0.0
    %924 = vmatpush1.msra.mxu0 0.0
    %925 = vmatprep.subr.mxu0 0.0
    %926 = vmatpush1.msra.mxu0 0.0
    %927 = vmatprep.subr.mxu0 0.0
    %928 = vmatpush1.msra.mxu0 0.0
    %929 = vmatprep.subr.mxu0 0.0
    %930 = vmatpush1.msra.mxu0 0.0
    %931 = vmatprep.subr.mxu0 0.0
    %932 = vmatpush1.msra.mxu0 0.0
    %933 = vmatprep.subr.mxu0 0.0
    %934 = vmatpush1.msra.mxu0 %v47
    %935 = vmatprep.subr.mxu0 0.0
    %936 = vmatpush1.msra.mxu0 %v46
    %937 = vmatprep.subr.mxu0 0.0
    %938 = vmatpush1.msra.mxu0 %v45
    %939 = vmatprep.subr.mxu0 0.0
    %940 = vmatpush1.msra.mxu0 %v44
    %941 = vmatprep.subr.mxu0 0.0
    %942 = vmatpush1.msra.mxu0 %v43
    %943 = vmatprep.subr.mxu0 0.0
    %944 = vmatpush1.msra.mxu0 %v42
    %945 = vmatprep.subr.mxu0 0.0
    %946 = vmatpush1.msra.mxu0 %v41
    %947 = vmatprep.subr.mxu0 0.0
    %948 = vmatpush1.msra.mxu0 %v40
    %949 = vmatprep.subr.mxu0 0.0
    %950 = vmatpush2.msra.mxu0 0.0
    %951 = vmatprep.subr.mxu0 0.0
    %952 = vmatpush2.msra.mxu0 0.0
    %953 = vmatprep.subr.mxu0 0.0
    %954 = vmatpush2.msra.mxu0 0.0
    %955 = vmatprep.subr.mxu0 0.0
    %956 = vmatpush2.msra.mxu0 0.0
    %957 = vmatprep.subr.mxu0 0.0
    %958 = vmatpush2.msra.mxu0 0.0
    %959 = vmatprep.subr.mxu0 0.0
    %960 = vmatpush2.msra.mxu0 0.0
    %961 = vmatprep.subr.mxu0 0.0
    %962 = vmatpush2.msra.mxu0 0.0
    %963 = vmatprep.subr.mxu0 0.0
    %964 = vmatpush2.msra.mxu0 0.0
    %965 = vmatprep.subr.mxu0 0.0
    %966 = vmatpush2.msra.mxu0 0.0
    %967 = vmatprep.subr.mxu0 0.0
    %968 = vmatpush2.msra.mxu0 0.0
    %969 = vmatprep.subr.mxu0 0.0
    %970 = vmatpush2.msra.mxu0 0.0
    %971 = vmatprep.subr.mxu0 0.0
    %972 = vmatpush2.msra.mxu0 0.0
    %973 = vmatprep.subr.mxu0 0.0
    %974 = vmatpush2.msra.mxu0 0.0
    %975 = vmatprep.subr.mxu0 0.0
    %976 = vmatpush2.msra.mxu0 0.0
    %977 = vmatprep.subr.mxu0 0.0
    %978 = vmatpush2.msra.mxu0 0.0
    %979 = vmatprep.subr.mxu0 0.0
    %980 = vmatpush2.msra.mxu0 0.0
    %981 = vmatprep.mubr.f32.mxu0 0.0
    %982 = vmatmul.mubr.f32.gmra.mxu0 %v915
    %v983 = vpop.f32.mrf.mxu0
    %v984 = vadd.f32 %v52, %v983
    %v985 = vpop.f32.mrf.mxu0
    %986 = vdwg.mxu0
    %v987 = vtanh.pop %v984
    %v988 = vmul.f32 %v987, %v31
    %v989 = vadd.f32 %v988, %v32
    %990 = vrot.lane.b32.xlu0 %v989, 96
    %v991 = vpop.permute.xlu0 %990
    %992 = vrot.lane.b32.xlu0 %v989, 64
    %v993 = vpop.permute.xlu0 %992
    %994 = vrot.lane.b32.xlu0 %v989, 32
    %v995 = vpop.permute.xlu0 %994
    %v996 = vmul.f32 %v991, %v818
    %v997 = vmul.f32 %v989, %v993
    %v998 = vadd.f32 %v996, %v997
    %v999 = vtanh.pop %v998
    %v1000 = vmul.f32 %v995, %v999
    %v1002 = vsel %vm195, %v908, 0
    %1004 = vmatprep.subr.mxu0 0.0
    %1005 = vmatpush1.msra.mxu0 0.0
    %1006 = vmatprep.subr.mxu0 0.0
    %1007 = vmatpush1.msra.mxu0 0.0
    %1008 = vmatprep.subr.mxu0 0.0
    %1009 = vmatpush1.msra.mxu0 0.0
    %1010 = vmatprep.subr.mxu0 0.0
    %1011 = vmatpush1.msra.mxu0 0.0
    %1012 = vmatprep.subr.mxu0 0.0
    %1013 = vmatpush1.msra.mxu0 0.0
    %1014 = vmatprep.subr.mxu0 0.0
    %1015 = vmatpush1.msra.mxu0 0.0
    %1016 = vmatprep.subr.mxu0 0.0
    %1017 = vmatpush1.msra.mxu0 0.0
    %1018 = vmatprep.subr.mxu0 0.0
    %1019 = vmatpush1.msra.mxu0 0.0
    %1020 = vmatprep.subr.mxu0 0.0
    %1021 = vmatpush1.msra.mxu0 0.0
    %1022 = vmatprep.subr.mxu0 0.0
    %1023 = vmatpush1.msra.mxu0 0.0
    %1024 = vmatprep.subr.mxu0 0.0
    %1025 = vmatpush1.msra.mxu0 0.0
    %1026 = vmatprep.subr.mxu0 0.0
    %1027 = vmatpush1.msra.mxu0 0.0
    %1028 = vmatprep.subr.mxu0 0.0
    %1029 = vmatpush1.msra.mxu0 %v38
    %1030 = vmatprep.subr.mxu0 0.0
    %1031 = vmatpush1.msra.mxu0 %v37
    %1032 = vmatprep.subr.mxu0 0.0
    %1033 = vmatpush1.msra.mxu0 %v36
    %1034 = vmatprep.subr.mxu0 0.0
    %1035 = vmatpush1.msra.mxu0 %v35
    %1036 = vmatprep.subr.mxu0 0.0
    %1037 = vmatpush2.msra.mxu0 0.0
    %1038 = vmatprep.subr.mxu0 0.0
    %1039 = vmatpush2.msra.mxu0 0.0
    %1040 = vmatprep.subr.mxu0 0.0
    %1041 = vmatpush2.msra.mxu0 0.0
    %1042 = vmatprep.subr.mxu0 0.0
    %1043 = vmatpush2.msra.mxu0 0.0
    %1044 = vmatprep.subr.mxu0 0.0
    %1045 = vmatpush2.msra.mxu0 0.0
    %1046 = vmatprep.subr.mxu0 0.0
    %1047 = vmatpush2.msra.mxu0 0.0
    %1048 = vmatprep.subr.mxu0 0.0
    %1049 = vmatpush2.msra.mxu0 0.0
    %1050 = vmatprep.subr.mxu0 0.0
    %1051 = vmatpush2.msra.mxu0 0.0
    %1052 = vmatprep.subr.mxu0 0.0
    %1053 = vmatpush2.msra.mxu0 0.0
    %1054 = vmatprep.subr.mxu0 0.0
    %1055 = vmatpush2.msra.mxu0 0.0
    %1056 = vmatprep.subr.mxu0 0.0
    %1057 = vmatpush2.msra.mxu0 0.0
    %1058 = vmatprep.subr.mxu0 0.0
    %1059 = vmatpush2.msra.mxu0 0.0
    %1060 = vmatprep.subr.mxu0 0.0
    %1061 = vmatpush2.msra.mxu0 0.0
    %1062 = vmatprep.subr.mxu0 0.0
    %1063 = vmatpush2.msra.mxu0 0.0
    %1064 = vmatprep.subr.mxu0 0.0
    %1065 = vmatpush2.msra.mxu0 0.0
    %1066 = vmatprep.subr.mxu0 0.0
    %1067 = vmatpush2.msra.mxu0 0.0
    %1068 = vmatprep.mubr.f32.mxu0 0.0
    %1069 = vmatmul.mubr.f32.gmra.mxu0 %v1002
    %v1070 = vpop.f32.mrf.mxu0
    %v1071 = vadd.f32 0.0, %v1070
    %v1072 = vpop.f32.mrf.mxu0
    %1073 = vdwg.mxu0
    %v1074 = vadd.f32 %v182, %v1071
    %v1075 = vtanh.pop %v1074
    %v1076 = vmul.f32 %v1075, %v31
    %v1077 = vadd.f32 %v1076, %v32
    %1078 = vrot.lane.b32.xlu0 %v1077, 96
    %v1079 = vpop.permute.xlu0 %1078
    %1080 = vrot.lane.b32.xlu0 %v1077, 64
    %v1081 = vpop.permute.xlu0 %1080
    %1082 = vrot.lane.b32.xlu0 %v1077, 32
    %v1083 = vpop.permute.xlu0 %1082
    %v1084 = vmul.f32 %v1079, %v906
    %v1085 = vmul.f32 %v1077, %v1081
    %v1086 = vadd.f32 %v1084, %v1085
    %v1087 = vtanh.pop %v1086
    %v1088 = vmul.f32 %v1083, %v1087
    %1090 = vrot.lane.b32.xlu0 %v1000, 32
    %v1091 = vpop.permute.xlu0 %1090
    %v1093 = vsel %vm195, %v908, %v1091
    %v1095 = vsel %vm373, %v1093, 0
    %1097 = vmatprep.subr.mxu0 0.0
    %1098 = vmatpush1.msra.mxu0 0.0
    %1099 = vmatprep.subr.mxu0 0.0
    %1100 = vmatpush1.msra.mxu0 0.0
    %1101 = vmatprep.subr.mxu0 0.0
    %1102 = vmatpush1.msra.mxu0 0.0
    %1103 = vmatprep.subr.mxu0 0.0
    %1104 = vmatpush1.msra.mxu0 0.0
    %1105 = vmatprep.subr.mxu0 0.0
    %1106 = vmatpush1.msra.mxu0 0.0
    %1107 = vmatprep.subr.mxu0 0.0
    %1108 = vmatpush1.msra.mxu0 0.0
    %1109 = vmatprep.subr.mxu0 0.0
    %1110 = vmatpush1.msra.mxu0 0.0
    %1111 = vmatprep.subr.mxu0 0.0
    %1112 = vmatpush1.msra.mxu0 0.0
    %1113 = vmatprep.subr.mxu0 0.0
    %1114 = vmatpush1.msra.mxu0 %v47
    %1115 = vmatprep.subr.mxu0 0.0
    %1116 = vmatpush1.msra.mxu0 %v46
    %1117 = vmatprep.subr.mxu0 0.0
    %1118 = vmatpush1.msra.mxu0 %v45
    %1119 = vmatprep.subr.mxu0 0.0
    %1120 = vmatpush1.msra.mxu0 %v44
    %1121 = vmatprep.subr.mxu0 0.0
    %1122 = vmatpush1.msra.mxu0 %v43
    %1123 = vmatprep.subr.mxu0 0.0
    %1124 = vmatpush1.msra.mxu0 %v42
    %1125 = vmatprep.subr.mxu0 0.0
    %1126 = vmatpush1.msra.mxu0 %v41
    %1127 = vmatprep.subr.mxu0 0.0
    %1128 = vmatpush1.msra.mxu0 %v40
    %1129 = vmatprep.subr.mxu0 0.0
    %1130 = vmatpush2.msra.mxu0 0.0
    %1131 = vmatprep.subr.mxu0 0.0
    %1132 = vmatpush2.msra.mxu0 0.0
    %1133 = vmatprep.subr.mxu0 0.0
    %1134 = vmatpush2.msra.mxu0 0.0
    %1135 = vmatprep.subr.mxu0 0.0
    %1136 = vmatpush2.msra.mxu0 0.0
    %1137 = vmatprep.subr.mxu0 0.0
    %1138 = vmatpush2.msra.mxu0 0.0
    %1139 = vmatprep.subr.mxu0 0.0
    %1140 = vmatpush2.msra.mxu0 0.0
    %1141 = vmatprep.subr.mxu0 0.0
    %1142 = vmatpush2.msra.mxu0 0.0
    %1143 = vmatprep.subr.mxu0 0.0
    %1144 = vmatpush2.msra.mxu0 0.0
    %1145 = vmatprep.subr.mxu0 0.0
    %1146 = vmatpush2.msra.mxu0 0.0
    %1147 = vmatprep.subr.mxu0 0.0
    %1148 = vmatpush2.msra.mxu0 0.0
    %1149 = vmatprep.subr.mxu0 0.0
    %1150 = vmatpush2.msra.mxu0 0.0
    %1151 = vmatprep.subr.mxu0 0.0
    %1152 = vmatpush2.msra.mxu0 0.0
    %1153 = vmatprep.subr.mxu0 0.0
    %1154 = vmatpush2.msra.mxu0 0.0
    %1155 = vmatprep.subr.mxu0 0.0
    %1156 = vmatpush2.msra.mxu0 0.0
    %1157 = vmatprep.subr.mxu0 0.0
    %1158 = vmatpush2.msra.mxu0 0.0
    %1159 = vmatprep.subr.mxu0 0.0
    %1160 = vmatpush2.msra.mxu0 0.0
    %1161 = vmatprep.mubr.f32.mxu0 0.0
    %1162 = vmatmul.mubr.f32.gmra.mxu0 %v1095
    %v1163 = vpop.f32.mrf.mxu0
    %v1164 = vadd.f32 %v52, %v1163
    %v1165 = vpop.f32.mrf.mxu0
    %1166 = vdwg.mxu0
    %v1167 = vtanh.pop %v1164
    %v1168 = vmul.f32 %v1167, %v31
    %v1169 = vadd.f32 %v1168, %v32
    %1170 = vrot.lane.b32.xlu0 %v1169, 96
    %v1171 = vpop.permute.xlu0 %1170
    %1172 = vrot.lane.b32.xlu0 %v1169, 64
    %v1173 = vpop.permute.xlu0 %1172
    %1174 = vrot.lane.b32.xlu0 %v1169, 32
    %v1175 = vpop.permute.xlu0 %1174
    %v1176 = vmul.f32 %v1171, %v998
    %v1177 = vmul.f32 %v1169, %v1173
    %v1178 = vadd.f32 %v1176, %v1177
    %v1179 = vtanh.pop %v1178
    %v1180 = vmul.f32 %v1175, %v1179
    %v1182 = vsel %vm195, %v1088, 0
    %1184 = vmatprep.subr.mxu0 0.0
    %1185 = vmatpush1.msra.mxu0 0.0
    %1186 = vmatprep.subr.mxu0 0.0
    %1187 = vmatpush1.msra.mxu0 0.0
    %1188 = vmatprep.subr.mxu0 0.0
    %1189 = vmatpush1.msra.mxu0 0.0
    %1190 = vmatprep.subr.mxu0 0.0
    %1191 = vmatpush1.msra.mxu0 0.0
    %1192 = vmatprep.subr.mxu0 0.0
    %1193 = vmatpush1.msra.mxu0 0.0
    %1194 = vmatprep.subr.mxu0 0.0
    %1195 = vmatpush1.msra.mxu0 0.0
    %1196 = vmatprep.subr.mxu0 0.0
    %1197 = vmatpush1.msra.mxu0 0.0
    %1198 = vmatprep.subr.mxu0 0.0
    %1199 = vmatpush1.msra.mxu0 0.0
    %1200 = vmatprep.subr.mxu0 0.0
    %1201 = vmatpush1.msra.mxu0 0.0
    %1202 = vmatprep.subr.mxu0 0.0
    %1203 = vmatpush1.msra.mxu0 0.0
    %1204 = vmatprep.subr.mxu0 0.0
    %1205 = vmatpush1.msra.mxu0 0.0
    %1206 = vmatprep.subr.mxu0 0.0
    %1207 = vmatpush1.msra.mxu0 0.0
    %1208 = vmatprep.subr.mxu0 0.0
    %1209 = vmatpush1.msra.mxu0 %v38
    %1210 = vmatprep.subr.mxu0 0.0
    %1211 = vmatpush1.msra.mxu0 %v37
    %1212 = vmatprep.subr.mxu0 0.0
    %1213 = vmatpush1.msra.mxu0 %v36
    %1214 = vmatprep.subr.mxu0 0.0
    %1215 = vmatpush1.msra.mxu0 %v35
    %1216 = vmatprep.subr.mxu0 0.0
    %1217 = vmatpush2.msra.mxu0 0.0
    %1218 = vmatprep.subr.mxu0 0.0
    %1219 = vmatpush2.msra.mxu0 0.0
    %1220 = vmatprep.subr.mxu0 0.0
    %1221 = vmatpush2.msra.mxu0 0.0
    %1222 = vmatprep.subr.mxu0 0.0
    %1223 = vmatpush2.msra.mxu0 0.0
    %1224 = vmatprep.subr.mxu0 0.0
    %1225 = vmatpush2.msra.mxu0 0.0
    %1226 = vmatprep.subr.mxu0 0.0
    %1227 = vmatpush2.msra.mxu0 0.0
    %1228 = vmatprep.subr.mxu0 0.0
    %1229 = vmatpush2.msra.mxu0 0.0
    %1230 = vmatprep.subr.mxu0 0.0
    %1231 = vmatpush2.msra.mxu0 0.0
    %1232 = vmatprep.subr.mxu0 0.0
    %1233 = vmatpush2.msra.mxu0 0.0
    %1234 = vmatprep.subr.mxu0 0.0
    %1235 = vmatpush2.msra.mxu0 0.0
    %1236 = vmatprep.subr.mxu0 0.0
    %1237 = vmatpush2.msra.mxu0 0.0
    %1238 = vmatprep.subr.mxu0 0.0
    %1239 = vmatpush2.msra.mxu0 0.0
    %1240 = vmatprep.subr.mxu0 0.0
    %1241 = vmatpush2.msra.mxu0 0.0
    %1242 = vmatprep.subr.mxu0 0.0
    %1243 = vmatpush2.msra.mxu0 0.0
    %1244 = vmatprep.subr.mxu0 0.0
    %1245 = vmatpush2.msra.mxu0 0.0
    %1246 = vmatprep.subr.mxu0 0.0
    %1247 = vmatpush2.msra.mxu0 0.0
    %1248 = vmatprep.mubr.f32.mxu0 0.0
    %1249 = vmatmul.mubr.f32.gmra.mxu0 %v1182
    %v1250 = vpop.f32.mrf.mxu0
    %v1251 = vadd.f32 0.0, %v1250
    %v1252 = vpop.f32.mrf.mxu0
    %1253 = vdwg.mxu0
    %v1254 = vadd.f32 %v187, %v1251
    %v1255 = vtanh.pop %v1254
    %v1256 = vmul.f32 %v1255, %v31
    %v1257 = vadd.f32 %v1256, %v32
    %1258 = vrot.lane.b32.xlu0 %v1257, 96
    %v1259 = vpop.permute.xlu0 %1258
    %1260 = vrot.lane.b32.xlu0 %v1257, 64
    %v1261 = vpop.permute.xlu0 %1260
    %1262 = vrot.lane.b32.xlu0 %v1257, 32
    %v1263 = vpop.permute.xlu0 %1262
    %v1264 = vmul.f32 %v1259, %v1086
    %v1265 = vmul.f32 %v1257, %v1261
    %v1266 = vadd.f32 %v1264, %v1265
    %v1267 = vtanh.pop %v1266
    %v1268 = vmul.f32 %v1263, %v1267
    %1270 = vrot.lane.b32.xlu0 %v1180, 32
    %v1271 = vpop.permute.xlu0 %1270
    %v1273 = vsel %vm195, %v1088, %v1271
    %v1275 = vsel %vm373, %v1273, 0
    %1277 = vmatprep.subr.mxu0 0.0
    %1278 = vmatpush1.msra.mxu0 0.0
    %1279 = vmatprep.subr.mxu0 0.0
    %1280 = vmatpush1.msra.mxu0 0.0
    %1281 = vmatprep.subr.mxu0 0.0
    %1282 = vmatpush1.msra.mxu0 0.0
    %1283 = vmatprep.subr.mxu0 0.0
    %1284 = vmatpush1.msra.mxu0 0.0
    %1285 = vmatprep.subr.mxu0 0.0
    %1286 = vmatpush1.msra.mxu0 0.0
    %1287 = vmatprep.subr.mxu0 0.0
    %1288 = vmatpush1.msra.mxu0 0.0
    %1289 = vmatprep.subr.mxu0 0.0
    %1290 = vmatpush1.msra.mxu0 0.0
    %1291 = vmatprep.subr.mxu0 0.0
    %1292 = vmatpush1.msra.mxu0 0.0
    %1293 = vmatprep.subr.mxu0 0.0
    %1294 = vmatpush1.msra.mxu0 %v47
    %1295 = vmatprep.subr.mxu0 0.0
    %1296 = vmatpush1.msra.mxu0 %v46
    %1297 = vmatprep.subr.mxu0 0.0
    %1298 = vmatpush1.msra.mxu0 %v45
    %1299 = vmatprep.subr.mxu0 0.0
    %1300 = vmatpush1.msra.mxu0 %v44
    %1301 = vmatprep.subr.mxu0 0.0
    %1302 = vmatpush1.msra.mxu0 %v43
    %1303 = vmatprep.subr.mxu0 0.0
    %1304 = vmatpush1.msra.mxu0 %v42
    %1305 = vmatprep.subr.mxu0 0.0
    %1306 = vmatpush1.msra.mxu0 %v41
    %1307 = vmatprep.subr.mxu0 0.0
    %1308 = vmatpush1.msra.mxu0 %v40
    %1309 = vmatprep.subr.mxu0 0.0
    %1310 = vmatpush2.msra.mxu0 0.0
    %1311 = vmatprep.subr.mxu0 0.0
    %1312 = vmatpush2.msra.mxu0 0.0
    %1313 = vmatprep.subr.mxu0 0.0
    %1314 = vmatpush2.msra.mxu0 0.0
    %1315 = vmatprep.subr.mxu0 0.0
    %1316 = vmatpush2.msra.mxu0 0.0
    %1317 = vmatprep.subr.mxu0 0.0
    %1318 = vmatpush2.msra.mxu0 0.0
    %1319 = vmatprep.subr.mxu0 0.0
    %1320 = vmatpush2.msra.mxu0 0.0
    %1321 = vmatprep.subr.mxu0 0.0
    %1322 = vmatpush2.msra.mxu0 0.0
    %1323 = vmatprep.subr.mxu0 0.0
    %1324 = vmatpush2.msra.mxu0 0.0
    %1325 = vmatprep.subr.mxu0 0.0
    %1326 = vmatpush2.msra.mxu0 0.0
    %1327 = vmatprep.subr.mxu0 0.0
    %1328 = vmatpush2.msra.mxu0 0.0
    %1329 = vmatprep.subr.mxu0 0.0
    %1330 = vmatpush2.msra.mxu0 0.0
    %1331 = vmatprep.subr.mxu0 0.0
    %1332 = vmatpush2.msra.mxu0 0.0
    %1333 = vmatprep.subr.mxu0 0.0
    %1334 = vmatpush2.msra.mxu0 0.0
    %1335 = vmatprep.subr.mxu0 0.0
    %1336 = vmatpush2.msra.mxu0 0.0
    %1337 = vmatprep.subr.mxu0 0.0
    %1338 = vmatpush2.msra.mxu0 0.0
    %1339 = vmatprep.subr.mxu0 0.0
    %1340 = vmatpush2.msra.mxu0 0.0
    %1341 = vmatprep.mubr.f32.mxu0 0.0
    %1342 = vmatmul.mubr.f32.gmra.mxu0 %v1275
    %v1343 = vpop.f32.mrf.mxu0
    %v1344 = vadd.f32 %v52, %v1343
    %v1345 = vpop.f32.mrf.mxu0
    %1346 = vdwg.mxu0
    %v1347 = vtanh.pop %v1344
    %v1348 = vmul.f32 %v1347, %v31
    %v1349 = vadd.f32 %v1348, %v32
    %1350 = vrot.lane.b32.xlu0 %v1349, 96
    %v1351 = vpop.permute.xlu0 %1350
    %1352 = vrot.lane.b32.xlu0 %v1349, 64
    %v1353 = vpop.permute.xlu0 %1352
    %1354 = vrot.lane.b32.xlu0 %v1349, 32
    %v1355 = vpop.permute.xlu0 %1354
    %v1356 = vmul.f32 %v1351, %v1178
    %v1357 = vmul.f32 %v1349, %v1353
    %v1358 = vadd.f32 %v1356, %v1357
    %v1359 = vtanh.pop %v1358
    %v1360 = vmul.f32 %v1355, %v1359
    %v1362 = vsel %vm195, %v1268, 0
    %1364 = vmatprep.subr.mxu0 0.0
    %1365 = vmatpush1.msra.mxu0 0.0
    %1366 = vmatprep.subr.mxu0 0.0
    %1367 = vmatpush1.msra.mxu0 0.0
    %1368 = vmatprep.subr.mxu0 0.0
    %1369 = vmatpush1.msra.mxu0 0.0
    %1370 = vmatprep.subr.mxu0 0.0
    %1371 = vmatpush1.msra.mxu0 0.0
    %1372 = vmatprep.subr.mxu0 0.0
    %1373 = vmatpush1.msra.mxu0 0.0
    %1374 = vmatprep.subr.mxu0 0.0
    %1375 = vmatpush1.msra.mxu0 0.0
    %1376 = vmatprep.subr.mxu0 0.0
    %1377 = vmatpush1.msra.mxu0 0.0
    %1378 = vmatprep.subr.mxu0 0.0
    %1379 = vmatpush1.msra.mxu0 0.0
    %1380 = vmatprep.subr.mxu0 0.0
    %1381 = vmatpush1.msra.mxu0 0.0
    %1382 = vmatprep.subr.mxu0 0.0
    %1383 = vmatpush1.msra.mxu0 0.0
    %1384 = vmatprep.subr.mxu0 0.0
    %1385 = vmatpush1.msra.mxu0 0.0
    %1386 = vmatprep.subr.mxu0 0.0
    %1387 = vmatpush1.msra.mxu0 0.0
    %1388 = vmatprep.subr.mxu0 0.0
    %1389 = vmatpush1.msra.mxu0 %v38
    %1390 = vmatprep.subr.mxu0 0.0
    %1391 = vmatpush1.msra.mxu0 %v37
    %1392 = vmatprep.subr.mxu0 0.0
    %1393 = vmatpush1.msra.mxu0 %v36
    %1394 = vmatprep.subr.mxu0 0.0
    %1395 = vmatpush1.msra.mxu0 %v35
    %1396 = vmatprep.subr.mxu0 0.0
    %1397 = vmatpush2.msra.mxu0 0.0
    %1398 = vmatprep.subr.mxu0 0.0
    %1399 = vmatpush2.msra.mxu0 0.0
    %1400 = vmatprep.subr.mxu0 0.0
    %1401 = vmatpush2.msra.mxu0 0.0
    %1402 = vmatprep.subr.mxu0 0.0
    %1403 = vmatpush2.msra.mxu0 0.0
    %1404 = vmatprep.subr.mxu0 0.0
    %1405 = vmatpush2.msra.mxu0 0.0
    %1406 = vmatprep.subr.mxu0 0.0
    %1407 = vmatpush2.msra.mxu0 0.0
    %1408 = vmatprep.subr.mxu0 0.0
    %1409 = vmatpush2.msra.mxu0 0.0
    %1410 = vmatprep.subr.mxu0 0.0
    %1411 = vmatpush2.msra.mxu0 0.0
    %1412 = vmatprep.subr.mxu0 0.0
    %1413 = vmatpush2.msra.mxu0 0.0
    %1414 = vmatprep.subr.mxu0 0.0
    %1415 = vmatpush2.msra.mxu0 0.0
    %1416 = vmatprep.subr.mxu0 0.0
    %1417 = vmatpush2.msra.mxu0 0.0
    %1418 = vmatprep.subr.mxu0 0.0
    %1419 = vmatpush2.msra.mxu0 0.0
    %1420 = vmatprep.subr.mxu0 0.0
    %1421 = vmatpush2.msra.mxu0 0.0
    %1422 = vmatprep.subr.mxu0 0.0
    %1423 = vmatpush2.msra.mxu0 0.0
    %1424 = vmatprep.subr.mxu0 0.0
    %1425 = vmatpush2.msra.mxu0 0.0
    %1426 = vmatprep.subr.mxu0 0.0
    %1427 = vmatpush2.msra.mxu0 0.0
    %1428 = vmatprep.mubr.f32.mxu0 0.0
    %1429 = vmatmul.mubr.f32.gmra.mxu0 %v1362
    %v1430 = vpop.f32.mrf.mxu0
    %v1431 = vadd.f32 0.0, %v1430
    %v1432 = vpop.f32.mrf.mxu0
    %1433 = vdwg.mxu0
    %v1434 = vadd.f32 %v192, %v1431
    %v1435 = vtanh.pop %v1434
    %v1436 = vmul.f32 %v1435, %v31
    %v1437 = vadd.f32 %v1436, %v32
    %1438 = vrot.lane.b32.xlu0 %v1437, 96
    %v1439 = vpop.permute.xlu0 %1438
    %1440 = vrot.lane.b32.xlu0 %v1437, 64
    %v1441 = vpop.permute.xlu0 %1440
    %1442 = vrot.lane.b32.xlu0 %v1437, 32
    %v1443 = vpop.permute.xlu0 %1442
    %v1444 = vmul.f32 %v1439, %v1266
    %v1445 = vmul.f32 %v1437, %v1441
    %v1446 = vadd.f32 %v1444, %v1445
    %v1447 = vtanh.pop %v1446
    %v1448 = vmul.f32 %v1443, %v1447
    %1450 = vrot.lane.b32.xlu0 %v1360, 32
    %v1451 = vpop.permute.xlu0 %1450
    %v1453 = vsel %vm195, %v1268, %v1451
    %v1455 = vsel %vm373, %v1453, 0
    %1457 = vmatprep.subr.mxu0 0.0
    %1458 = vmatpush1.msra.mxu0 0.0
    %1459 = vmatprep.subr.mxu0 0.0
    %1460 = vmatpush1.msra.mxu0 0.0
    %1461 = vmatprep.subr.mxu0 0.0
    %1462 = vmatpush1.msra.mxu0 0.0
    %1463 = vmatprep.subr.mxu0 0.0
    %1464 = vmatpush1.msra.mxu0 0.0
    %1465 = vmatprep.subr.mxu0 0.0
    %1466 = vmatpush1.msra.mxu0 0.0
    %1467 = vmatprep.subr.mxu0 0.0
    %1468 = vmatpush1.msra.mxu0 0.0
    %1469 = vmatprep.subr.mxu0 0.0
    %1470 = vmatpush1.msra.mxu0 0.0
    %1471 = vmatprep.subr.mxu0 0.0
    %1472 = vmatpush1.msra.mxu0 0.0
    %1473 = vmatprep.subr.mxu0 0.0
    %1474 = vmatpush1.msra.mxu0 %v47
    %1475 = vmatprep.subr.mxu0 0.0
    %1476 = vmatpush1.msra.mxu0 %v46
    %1477 = vmatprep.subr.mxu0 0.0
    %1478 = vmatpush1.msra.mxu0 %v45
    %1479 = vmatprep.subr.mxu0 0.0
    %1480 = vmatpush1.msra.mxu0 %v44
    %1481 = vmatprep.subr.mxu0 0.0
    %1482 = vmatpush1.msra.mxu0 %v43
    %1483 = vmatprep.subr.mxu0 0.0
    %1484 = vmatpush1.msra.mxu0 %v42
    %1485 = vmatprep.subr.mxu0 0.0
    %1486 = vmatpush1.msra.mxu0 %v41
    %1487 = vmatprep.subr.mxu0 0.0
    %1488 = vmatpush1.msra.mxu0 %v40
    %1489 = vmatprep.subr.mxu0 0.0
    %1490 = vmatpush2.msra.mxu0 0.0
    %1491 = vmatprep.subr.mxu0 0.0
    %1492 = vmatpush2.msra.mxu0 0.0
    %1493 = vmatprep.subr.mxu0 0.0
    %1494 = vmatpush2.msra.mxu0 0.0
    %1495 = vmatprep.subr.mxu0 0.0
    %1496 = vmatpush2.msra.mxu0 0.0
    %1497 = vmatprep.subr.mxu0 0.0
    %1498 = vmatpush2.msra.mxu0 0.0
    %1499 = vmatprep.subr.mxu0 0.0
    %1500 = vmatpush2.msra.mxu0 0.0
    %1501 = vmatprep.subr.mxu0 0.0
    %1502 = vmatpush2.msra.mxu0 0.0
    %1503 = vmatprep.subr.mxu0 0.0
    %1504 = vmatpush2.msra.mxu0 0.0
    %1505 = vmatprep.subr.mxu0 0.0
    %1506 = vmatpush2.msra.mxu0 0.0
    %1507 = vmatprep.subr.mxu0 0.0
    %1508 = vmatpush2.msra.mxu0 0.0
    %1509 = vmatprep.subr.mxu0 0.0
    %1510 = vmatpush2.msra.mxu0 0.0
    %1511 = vmatprep.subr.mxu0 0.0
    %1512 = vmatpush2.msra.mxu0 0.0
    %1513 = vmatprep.subr.mxu0 0.0
    %1514 = vmatpush2.msra.mxu0 0.0
    %1515 = vmatprep.subr.mxu0 0.0
    %1516 = vmatpush2.msra.mxu0 0.0
    %1517 = vmatprep.subr.mxu0 0.0
    %1518 = vmatpush2.msra.mxu0 0.0
    %1519 = vmatprep.subr.mxu0 0.0
    %1520 = vmatpush2.msra.mxu0 0.0
    %1521 = vmatprep.mubr.f32.mxu0 0.0
    %1522 = vmatmul.mubr.f32.gmra.mxu0 %v1455
    %v1523 = vpop.f32.mrf.mxu0
    %v1524 = vadd.f32 %v52, %v1523
    %v1525 = vpop.f32.mrf.mxu0
    %1526 = vdwg.mxu0
    %v1527 = vtanh.pop %v1524
    %v1528 = vmul.f32 %v1527, %v31
    %v1529 = vadd.f32 %v1528, %v32
    %1530 = vrot.lane.b32.xlu0 %v1529, 96
    %v1531 = vpop.permute.xlu0 %1530
    %1532 = vrot.lane.b32.xlu0 %v1529, 64
    %v1533 = vpop.permute.xlu0 %1532
    %1534 = vrot.lane.b32.xlu0 %v1529, 32
    %v1535 = vpop.permute.xlu0 %1534
    %v1536 = vmul.f32 %v1531, %v1358
    %v1537 = vmul.f32 %v1529, %v1533
    %v1538 = vadd.f32 %v1536, %v1537
    %v1539 = vtanh.pop %v1538
    %v1540 = vmul.f32 %v1535, %v1539
    %1542 = vrot.lane.b32.xlu0 %v1540, 32
    %v1543 = vpop.permute.xlu0 %1542
    %v1545 = vsel %vm195, %v1448, %v1543
    %v1547 = vsel %vm373, %v1545, 0
    %1549 = vmatprep.subr.mxu0 0.0
    %1550 = vmatpush1.msra.mxu0 0.0
    %1551 = vmatprep.subr.mxu0 0.0
    %1552 = vmatpush1.msra.mxu0 0.0
    %1553 = vmatprep.subr.mxu0 0.0
    %1554 = vmatpush1.msra.mxu0 0.0
    %1555 = vmatprep.subr.mxu0 0.0
    %1556 = vmatpush1.msra.mxu0 0.0
    %1557 = vmatprep.subr.mxu0 0.0
    %1558 = vmatpush1.msra.mxu0 0.0
    %1559 = vmatprep.subr.mxu0 0.0
    %1560 = vmatpush1.msra.mxu0 0.0
    %1561 = vmatprep.subr.mxu0 0.0
    %1562 = vmatpush1.msra.mxu0 0.0
    %1563 = vmatprep.subr.mxu0 0.0
    %1564 = vmatpush1.msra.mxu0 0.0
    %1565 = vmatprep.subr.mxu0 0.0
    %1566 = vmatpush1.msra.mxu0 %v47
    %1567 = vmatprep.subr.mxu0 0.0
    %1568 = vmatpush1.msra.mxu0 %v46
    %1569 = vmatprep.subr.mxu0 0.0
    %1570 = vmatpush1.msra.mxu0 %v45
    %1571 = vmatprep.subr.mxu0 0.0
    %1572 = vmatpush1.msra.mxu0 %v44
    %1573 = vmatprep.subr.mxu0 0.0
    %1574 = vmatpush1.msra.mxu0 %v43
    %1575 = vmatprep.subr.mxu0 0.0
    %1576 = vmatpush1.msra.mxu0 %v42
    %1577 = vmatprep.subr.mxu0 0.0
    %1578 = vmatpush1.msra.mxu0 %v41
    %1579 = vmatprep.subr.mxu0 0.0
    %1580 = vmatpush1.msra.mxu0 %v40
    %1581 = vmatprep.subr.mxu0 0.0
    %1582 = vmatpush2.msra.mxu0 0.0
    %1583 = vmatprep.subr.mxu0 0.0
    %1584 = vmatpush2.msra.mxu0 0.0
    %1585 = vmatprep.subr.mxu0 0.0
    %1586 = vmatpush2.msra.mxu0 0.0
    %1587 = vmatprep.subr.mxu0 0.0
    %1588 = vmatpush2.msra.mxu0 0.0
    %1589 = vmatprep.subr.mxu0 0.0
    %1590 = vmatpush2.msra.mxu0 0.0
    %1591 = vmatprep.subr.mxu0 0.0
    %1592 = vmatpush2.msra.mxu0 0.0
    %1593 = vmatprep.subr.mxu0 0.0
    %1594 = vmatpush2.msra.mxu0 0.0
    %1595 = vmatprep.subr.mxu0 0.0
    %1596 = vmatpush2.msra.mxu0 0.0
    %1597 = vmatprep.subr.mxu0 0.0
    %1598 = vmatpush2.msra.mxu0 0.0
    %1599 = vmatprep.subr.mxu0 0.0
    %1600 = vmatpush2.msra.mxu0 0.0
    %1601 = vmatprep.subr.mxu0 0.0
    %1602 = vmatpush2.msra.mxu0 0.0
    %1603 = vmatprep.subr.mxu0 0.0
    %1604 = vmatpush2.msra.mxu0 0.0
    %1605 = vmatprep.subr.mxu0 0.0
    %1606 = vmatpush2.msra.mxu0 0.0
    %1607 = vmatprep.subr.mxu0 0.0
    %1608 = vmatpush2.msra.mxu0 0.0
    %1609 = vmatprep.subr.mxu0 0.0
    %1610 = vmatpush2.msra.mxu0 0.0
    %1611 = vmatprep.subr.mxu0 0.0
    %1612 = vmatpush2.msra.mxu0 0.0
    %1613 = vmatprep.mubr.f32.mxu0 0.0
    %1614 = vmatmul.mubr.f32.gmra.mxu0 %v1547
    %v1615 = vpop.f32.mrf.mxu0
    %v1616 = vadd.f32 %v52, %v1615
    %v1617 = vpop.f32.mrf.mxu0
    %1618 = vdwg.mxu0
    %v1619 = vtanh.pop %v1616
    %v1620 = vmul.f32 %v1619, %v31
    %v1621 = vadd.f32 %v1620, %v32
    %1622 = vrot.lane.b32.xlu0 %v1621, 96
    %v1623 = vpop.permute.xlu0 %1622
    %1624 = vrot.lane.b32.xlu0 %v1621, 64
    %v1625 = vpop.permute.xlu0 %1624
    %1626 = vrot.lane.b32.xlu0 %v1621, 32
    %v1627 = vpop.permute.xlu0 %1626
    %v1628 = vmul.f32 %v1623, %v1538
    %v1629 = vmul.f32 %v1621, %v1625
    %v1630 = vadd.f32 %v1628, %v1629
    %v1631 = vtanh.pop %v1630
    %v1632 = vmul.f32 %v1627, %v1631
    %1633 = vrot.lane.b32.xlu0 %v820, 64
    %v1634 = vpop.permute.xlu0 %1633
    %1636 = vrot.lane.b32.xlu0 %v1000, 96
    %v1637 = vpop.permute.xlu0 %1636
    %1639 = vrot.lane.b32.xlu0 %v1540, 64
    %v1640 = vpop.permute.xlu0 %1639
    %1643 = vrot.lane.b32.xlu0 %v1632, 96
    %v1644 = vpop.permute.xlu0 %1643
    %v1646 = vsel %vm195, %v460, %v731
    %v1647 = vsel %vm373, %v1646, %v1634
    %vm1648 = vcmask 785408
    %v1649 = vsel %vm1648, %v1647, %v1637
    %v1650 = vsel %vm195, %v1180, %v1451
    %v1651 = vsel %vm373, %v1650, %v1640
    %v1652 = vsel %vm1648, %v1651, %v1644
    %1653 = vst [vmem:[#allocation5] sm:$0xff] %v1649
    %1654 = vst [vmem:[#allocation5 + $0x8] sm:$0xff] %v1652
    // Predicated region
    $region14: #{tpu_custom_call.1} parent=1 // pred_check
      _
    $region15: #{tpu_custom_call.1} parent=1 // pred_check_branch
      %1656 = sbr.rel (0) target = $region17
    $region16: #{tpu_custom_call.1} parent=1 // pred_region
      %s1658 = ssub.s32 256, 256
      %1659 = vsyncadd [#allocation4], %s1658
      %s1661 = sshll.u32 [#allocation5], 4
      %s1662 = int_to_ptr.vmem [resolvable:$true] %s1661
      %1664 = dma.vmem_to_hbm [thread:$0]  %s1662, 256, %s2, [#allocation4]
    $region17: #{tpu_custom_call.1} parent=1 // pred_fallthru
      _
    // Predicated region
    $region18: #{tpu_custom_call.1} parent=1 // pred_check
      _
    $region19: #{tpu_custom_call.1} parent=1 // pred_check_branch
      %1666 = sbr.rel (0) target = $region21
    $region20: #{tpu_custom_call.1} parent=1 // pred_region
      %1667 = dma.done [#allocation4], 256
    $region21: #{tpu_custom_call.1} parent=1 // pred_fallthru
      _
    %1668 = vsyncpa [#allocation3], 1
    %1669 = vsyncpa [#allocation4], 1

</llo_original>
